<compile_context>
chip_gen: v6e
topology: v6e:2x2x1
jax: 0.10.0
libtpu: 0.0.40
codegen_flags: <defaults>
</compile_context>

<pallas_src>
import functools
import math

import jax
import jax.numpy as jnp
from jax.experimental import pallas as pl
from jax.experimental.pallas import tpu as pltpu

NEG_INF = -1e9  # additive key_padding_mask value


def _padded_bytes(shape, dtype):
    """Rough (8,128)-tiled VMEM footprint of one buffer (for the vmem budget)."""
    itemsize = jnp.dtype(dtype).itemsize
    dims = list(shape)
    sub = {4: 8, 2: 16, 1: 32}.get(itemsize, 8)
    if len(dims) >= 1:
        dims[-1] = -(-dims[-1] // 128) * 128
    if len(dims) >= 2:
        dims[-2] = -(-dims[-2] // sub) * sub
    n = itemsize
    for d in dims:
        n *= d
    return n


# ---------------------------------------------------------------------------
# Fused kernel: one batch tile per grid step; all layers + head inside the body.
# ---------------------------------------------------------------------------
def _disc_fused_kernel(x_ref, madd_ref, cls_ref, seg_ref,
                       embed_w_ref, fc1_w_ref, out_w_ref,
                       fc0_ref, wq_ref, wkv_ref, wo_ref,
                       fc1c_ref, fc2c_ref, slab_ref,
                       out_ref,
                       h_sc,
                       *, TB, N, E, H, nh, hd, L, W):
    cdt = fc0_ref.dtype  # matmul operand dtype (f32 or bf16); accumulation is f32

    def mmT(a, w):  # a @ w.T on the MXU, f32 accumulate
        return jax.lax.dot_general(a.astype(cdt), w.astype(cdt),
                                   (((1,), (1,)), ((), ())),
                                   preferred_element_type=jnp.float32)

    def mm(a, b):   # a @ b on the MXU, f32 accumulate
        return jax.lax.dot_general(a.astype(cdt), b.astype(cdt),
                                   (((1,), (0,)), ((), ())),
                                   preferred_element_type=jnp.float32)

    def leaky(z):
        return jnp.where(z >= 0, z, 0.01 * z)

    # ---- prologue (once per batch tile): embed tokens, VMEM-resident across layers
    nd = x_ref.shape[-1]
    x2 = x_ref[...].reshape(TB * N, nd)                               # (TB*N, nd_pad)
    h_sc[...] = leaky(mmT(x2, embed_w_ref[...])).astype(h_sc.dtype)   # (TB*N, E)

    seg = seg_ref[...]                  # (E, nh) per-head one-hot segmenter
    madd = madd_ref[...]                # (TB, N, 1) additive key-padding mask
    scale = 1.0 / math.sqrt(hd)

    def layer(l, xcls):
        res = xcls                                          # (TB, E) f32
        slab = slab_ref[l]                                  # (6, E): bq,bk,bv,bo,gamma,beta
        h = h_sc[...]                                       # (TB*N, E)

        # x = act(fc0(x))   (keys / values source; fc0 weight is pre-normalized)
        hkv = leaky(mmT(h, fc0_ref[l]))                     # (TB*N, H)

        # MultiheadAttention(query=x_cls, key=value=hkv), query length 1 per row.
        q = mmT(xcls, wq_ref[l]) + slab[0:1]                # (TB, E)
        kv = mmT(hkv, wkv_ref[l])                           # (TB*N, 2E)  fused K|V projection
        k = kv[:, :E] + slab[1:2]
        v = kv[:, E:] + slab[2:3]

        # per-head logits via the seg one-hot; q broadcasts implicitly over tokens
        qk = k.reshape(TB, N, E) * q.reshape(TB, 1, E)
        s = mm(qk.reshape(TB * N, E), seg) * scale          # (TB*N, nh)
        s = s.reshape(TB, N, nh) + madd                     # key-padding mask
        m = jnp.max(s, axis=1, keepdims=True)               # softmax over tokens
        p = jnp.exp(s - m)
        alpha = p / jnp.sum(p, axis=1, keepdims=True)       # (TB, N, nh)
        aw = mmT(alpha.reshape(TB * N, nh), seg)            # (TB*N, E) expand heads
        ctx = (aw * v).reshape(TB, N, E).sum(axis=1)        # (TB, E)
        attn = mmT(ctx, wo_ref[l]) + slab[3:4]              # out_proj

        # x_cls = act(fc1_cls(x_cls)); x_cls = act(fc2_cls(LayerNorm(x_cls + res)))
        xc2 = leaky(mmT(attn, fc1c_ref[l]))                 # (TB, H)
        y = xc2 + res
        mu = jnp.mean(y, axis=-1, keepdims=True)
        var = jnp.mean((y - mu) ** 2, axis=-1, keepdims=True)
        yn = (y - mu) * jax.lax.rsqrt(var + 1e-5) * slab[4:5] + slab[5:6]
        return leaky(mmT(yn, fc2c_ref[l]))                  # (TB, E)

    xcls = jnp.broadcast_to(cls_ref[...], (TB, E))
    if L <= 8:
        # short fixed trip count: static unroll gives the LLO scheduler full visibility
        for l in range(L):
            xcls = layer(l, xcls)
    else:
        # long stacks: bound live ranges with an in-kernel loop
        xcls = jax.lax.fori_loop(0, L, layer, xcls)

    # ---- head (fused): res + fc1 + out, packed into ONE lane-dense (TB, W) slab.
    # out_w_ref is zero-padded to (W - E, E) so its matmul yields [score | 0...].
    yy = leaky(mmT(xcls, fc1_w_ref[...]))                   # (TB, H)
    score_blk = mmT(yy, out_w_ref[...])                     # (TB, W - E), col 0 = score
    out_ref[...] = jnp.concatenate([xcls, score_blk], axis=-1).astype(out_ref.dtype)


# ---------------------------------------------------------------------------
# Wrapper: weight-norm hoist, layer stacking, batch tiling, single pallas_call.
# ---------------------------------------------------------------------------
def disc_forward_pallas(x, mask, params, heads, matmul_dtype=jnp.bfloat16):
    B, N, n_dim = x.shape
    E = params["embed_w"].shape[0]
    H = params["fc1_w"].shape[0]
    L = len(params["layers"])
    nh = heads
    hd = E // nh

    # --- batch tiling: big tiles to amortize per-step overhead and fill the MXU
    #     M-stream; keep >= 2 tiles when B is large enough so the "parallel" axis
    #     can shard across v7x's two TensorCores (v5e/v6e are single-TC).
    TB = int(min(B, 128))
    if -(-B // TB) < 2 and B >= 64:
        TB = -(-(B // 2) // 8) * 8
    TB = max(TB, 1)
    B_pad = -(-B // TB) * TB
    num_bt = B_pad // TB

    # --- pad the tiny feature dim (n_dim is typically 3-4) up to 8 so the embed
    #     matmul is not a K=4 MXU pass; padded columns are zero on both operands.
    nd_pad = max(8, -(-n_dim // 8) * 8)

    if B_pad != B:
        x = jnp.pad(x, ((0, B_pad - B), (0, 0), (0, 0)))
        mask = jnp.pad(mask, ((0, B_pad - B), (0, 0)), constant_values=True)
    if nd_pad != n_dim:
        x = jnp.pad(x, ((0, 0), (0, 0), (0, nd_pad - n_dim)))
    x = x.astype(matmul_dtype)   # halves the only per-step streamed input in bf16 mode

    madd = jnp.where(mask, NEG_INF, 0.0).astype(jnp.float32).reshape(B_pad, N, 1)

    # Weight normalization hoisted out of the kernel: done exactly once here in f32
    # (grid-invariant work removed from the kernel), then cast to the operand dtype.
    def wnorm(w):
        w = w.astype(jnp.float32)
        n = jnp.sqrt(jnp.sum(w * w, axis=-1, keepdims=True)) + 1e-8
        return (w / n).astype(matmul_dtype)

    def stack(name):
        return jnp.stack([lp[name] for lp in params["layers"]], axis=0)

    W = -(-(E + 1) // 128) * 128        # lane-dense combined output width

    embed_w = wnorm(params["embed_w"])                          # (E, n_dim)
    if nd_pad != n_dim:
        embed_w = jnp.pad(embed_w, ((0, 0), (0, nd_pad - n_dim)))
    fc1_w = wnorm(params["fc1_w"])                              # (H, E)
    out_w = jnp.pad(wnorm(params["out_w"]), ((0, W - E - 1), (0, 0)))  # (W-E, E), row0 = out
    cls = params["cls_token"].reshape(1, E).astype(jnp.float32)
    seg = (jnp.arange(E)[:, None] // hd == jnp.arange(nh)[None, :]).astype(matmul_dtype)

    fc0_all = wnorm(stack("fc0_w"))                             # (L, H, E)
    fc1c_all = wnorm(stack("fc1_cls_w"))                        # (L, H, E)
    fc2c_all = wnorm(stack("fc2_cls_w"))                        # (L, E, H)
    wq_all = stack("wq").astype(matmul_dtype)                   # (L, E, E)
    wkv_all = jnp.concatenate([stack("wk"), stack("wv")], axis=1).astype(matmul_dtype)  # (L, 2E, E)
    wo_all = stack("wo").astype(matmul_dtype)                   # (L, E, E)
    slab_all = jnp.stack([stack("bq"), stack("bk"), stack("bv"), stack("bo"),
                          stack("gamma"), stack("beta")], axis=1).astype(jnp.float32)   # (L, 6, E)

    def bspec(shape):    # batch-tiled (streamed per grid step)
        nd = len(shape)
        return pl.BlockSpec(shape, lambda b: (b,) + (0,) * (nd - 1))

    def cspec(shape):    # grid-invariant: DMA'd once, VMEM-resident for the whole call
        nd = len(shape)
        return pl.BlockSpec(shape, lambda b: (0,) * nd)

    in_specs = [
        bspec((TB, N, nd_pad)),       # x
        bspec((TB, N, 1)),            # additive key-padding mask
        cspec((1, E)),                # cls token
        cspec((E, nh)),               # head segment one-hot
        cspec((E, nd_pad)),           # embed (pre-normalized)
        cspec((H, E)),                # fc1 head (pre-normalized)
        cspec((W - E, E)),            # out head (pre-normalized, zero-padded rows)
        cspec((L, H, E)),             # fc0            (resident full stack)
        cspec((L, E, E)),             # wq
        cspec((L, 2 * E, E)),         # wk|wv fused
        cspec((L, E, E)),             # wo
        cspec((L, H, E)),             # fc1_cls
        cspec((L, E, H)),             # fc2_cls
        cspec((L, 6, E)),             # bq,bk,bv,bo,gamma,beta
    ]
    out_specs = pl.BlockSpec((TB, W), lambda b: (b, 0))   # [res | score | 0-pad], lane-dense

    args = (x, madd, cls, seg, embed_w, fc1_w, out_w,
            fc0_all, wq_all, wkv_all, wo_all, fc1c_all, fc2c_all, slab_all)

    # --- explicit VMEM budget: resident weight stack + double-buffered streamed
    #     blocks + scratch, with headroom (kept far below v7x's 64 MiB physical).
    resident = sum(_padded_bytes(a.shape, a.dtype) for a in args[2:])
    streamed = 2 * (_padded_bytes((TB, N, nd_pad), matmul_dtype)
                    + _padded_bytes((TB, N, 1), jnp.float32)
                    + _padded_bytes((TB, W), jnp.float32))
    scratch = _padded_bytes((TB * N, E), matmul_dtype)
    vmem_limit = int(min(48 * 1024 * 1024,
                         max(4 * 1024 * 1024,
                             2 * (resident + streamed + scratch) + (1 << 20))))

    # advisory cost estimate so XLA schedules sensibly around the custom call
    flops = 2 * B_pad * (N * nd_pad * E
                         + L * (N * E * H + 2 * N * E * E + 2 * E * E
                                + 2 * N * E * nh + 2 * E * H)
                         + E * H + H * (W - E))
    bytes_accessed = sum(int(a.size) * a.dtype.itemsize for a in args) + B_pad * W * 4
    cost = pl.CostEstimate(flops=int(flops),
                           transcendentals=int(B_pad * L * (N * nh + 1)),
                           bytes_accessed=int(bytes_accessed))

    kernel = functools.partial(_disc_fused_kernel,
                               TB=TB, N=N, E=E, H=H, nh=nh, hd=hd, L=L, W=W)

    comb = pl.pallas_call(
        kernel,
        out_shape=jax.ShapeDtypeStruct((B_pad, W), jnp.float32),
        grid_spec=pltpu.PrefetchScalarGridSpec(
            num_scalar_prefetch=0,
            grid=(num_bt,),                       # batch tiles only; layers folded in-body
            in_specs=in_specs,
            out_specs=out_specs,
            scratch_shapes=[pltpu.VMEM((TB * N, E), matmul_dtype)]),  # resident tokens
        compiler_params=pltpu.CompilerParams(
            dimension_semantics=("parallel",),
            vmem_limit_bytes=vmem_limit),
        cost_estimate=cost,
    )(*args)

    score = comb[:B, E:E + 1]     # (B, 1)
    res = comb[:B, :E]            # (B, E)
    return score, res             # == (out(x_cls).squeeze(-1), res.squeeze(1)), mean_field=True


# ---------------------------------------------------------------------------
# Pure-JAX reference (faithful to the PyTorch module) for correctness check
# ---------------------------------------------------------------------------
def _leaky(z):
    return jnp.where(z >= 0, z, 0.01 * z)


def _wnl_ref(x, w):
    norm = jnp.sqrt(jnp.sum(w * w, axis=1)) + 1e-8
    return jnp.matmul(x, w.T) / norm


def disc_forward_ref(x, mask, params, heads):
    B, N, _ = x.shape
    E = params["embed_w"].shape[0]
    hd = E // heads
    h = _leaky(_wnl_ref(x, params["embed_w"]))
    x_cls = jnp.broadcast_to(params["cls_token"].reshape(1, 1, E), (B, 1, E))
    madd = jnp.where(mask, NEG_INF, 0.0)
    for lp in params["layers"]:
        res = x_cls
        hk = _leaky(_wnl_ref(h, lp["fc0_w"]))
        q = x_cls @ lp["wq"].T + lp["bq"]
        k = hk @ lp["wk"].T + lp["bk"]
        v = hk @ lp["wv"].T + lp["bv"]
        qh = q.reshape(B, 1, heads, hd)
        kh = k.reshape(B, N, heads, hd)
        vh = v.reshape(B, N, heads, hd)
        s = jnp.einsum("bqhd,bkhd->bhqk", qh, kh) / math.sqrt(hd)
        s = s + madd[:, None, None, :]
        a = jax.nn.softmax(s, axis=-1)
        ctx = jnp.einsum("bhqk,bkhd->bqhd", a, vh).reshape(B, 1, E)
        ao = ctx @ lp["wo"].T + lp["bo"]
        x2 = _leaky(_wnl_ref(ao, lp["fc1_cls_w"]))
        y = x2 + res
        mu = y.mean(-1, keepdims=True)
        var = ((y - mu) ** 2).mean(-1, keepdims=True)
        yn = (y - mu) / jnp.sqrt(var + 1e-5) * lp["gamma"] + lp["beta"]
        x_cls = _leaky(_wnl_ref(yn, lp["fc2_cls_w"]))
    res = x_cls
    y = _leaky(_wnl_ref(x_cls, params["fc1_w"]))
    score = _wnl_ref(y, params["out_w"])[:, 0, :]   # (B, 1)
    return score, res[:, 0, :]


# ---------------------------------------------------------------------------
# Deterministic parameter construction (synthetic; shapes follow __init__)
# ---------------------------------------------------------------------------
def make_params(key, n_dim, hidden, num_layers, heads):
    E = hidden  # l_dim = hidden

    def nrm(k, shape, fan_in):
        return jax.random.normal(k, shape, jnp.float32) * (1.0 / math.sqrt(fan_in))

    keys = jax.random.split(key, 4 + num_layers)
    params = {
        "embed_w": nrm(keys[0], (E, n_dim), n_dim),
        "out_w": nrm(keys[1], (1, E), E),
        "fc1_w": nrm(keys[2], (hidden, E), E),
        "cls_token": jax.random.normal(keys[3], (1, 1, E), jnp.float32),
        "layers": [],
    }
    for i in range(num_layers):
        lk = jax.random.split(keys[4 + i], 10)
        params["layers"].append({
            "fc0_w": nrm(lk[0], (hidden, E), E),
            "fc1_cls_w": nrm(lk[1], (hidden, E), E),
            "fc2_cls_w": nrm(lk[2], (E, hidden), hidden),
            "wq": nrm(lk[3], (E, E), E),
            "wk": nrm(lk[4], (E, E), E),
            "wv": nrm(lk[5], (E, E), E),
            "bq": nrm(lk[6], (E,), E),
            "bk": nrm(lk[7], (E,), E),
            "bv": nrm(lk[8], (E,), E),
            "wo": nrm(lk[9], (E, E), E),
            "bo": jnp.zeros((E,), jnp.float32),
            "gamma": jnp.ones((hidden,), jnp.float32),   # LayerNorm default init
            "beta": jnp.zeros((hidden,), jnp.float32),
        })
    return params


if __name__ == "__main__":
    # Small shapes consistent with the module: n_dim=4, hidden=l_dim=32, heads=4
    B, N, n_dim = 2, 8, 4
    hidden, num_layers, heads = 32, 2, 4

    root = jax.random.PRNGKey(0)
    k_x, k_p = jax.random.split(root)
    x = jax.random.normal(k_x, (B, N, n_dim), jnp.float32)
    # key_padding_mask: True == padded token (PyTorch convention)
    mask = jnp.array([[False] * N,
                      [False] * (N - 2) + [True] * 2])
    params = make_params(k_p, n_dim, hidden, num_layers, heads)

    # f32 matmul-operand mode (strict check against the reference)
    fwd_f32 = jax.jit(functools.partial(disc_forward_pallas, heads=heads,
                                        matmul_dtype=jnp.float32))
    score_p, res_p = fwd_f32(x, mask, params)
    jax.block_until_ready((score_p, res_p))

    score_r, res_r = disc_forward_ref(x, mask, params, heads)
    assert score_p.shape == (B, 1) and res_p.shape == (B, hidden)
    assert jnp.allclose(score_p, score_r, atol=2e-3, rtol=2e-3)
    assert jnp.allclose(res_p, res_r, atol=2e-3, rtol=2e-3)

    # default bf16 matmul-operand mode (MXU-native on all generations);
    # softmax / LayerNorm / bias math stays f32.
    fwd_bf16 = jax.jit(functools.partial(disc_forward_pallas, heads=heads))
    score_b, res_b = fwd_bf16(x, mask, params)
    jax.block_until_ready((score_b, res_b))
    assert jnp.allclose(score_b, score_r, atol=5e-2, rtol=5e-2)
    assert jnp.allclose(res_b, res_r, atol=5e-2, rtol=5e-2)

    print("KERNEL_OK")
</pallas_src>

<mosaic_0001>
module attributes {stable_mosaic.version = 11 : i64} {
  func.func @_disc_fused_kernel(%arg0: i32, %arg1: memref<2x8x8xf32, #tpu.memory_space<vmem>>, %arg2: memref<2x8x1xf32, #tpu.memory_space<vmem>>, %arg3: memref<1x32xf32, #tpu.memory_space<vmem>>, %arg4: memref<32x4xf32, #tpu.memory_space<vmem>>, %arg5: memref<32x8xf32, #tpu.memory_space<vmem>>, %arg6: memref<32x32xf32, #tpu.memory_space<vmem>>, %arg7: memref<96x32xf32, #tpu.memory_space<vmem>>, %arg8: memref<2x32x32xf32, #tpu.memory_space<vmem>>, %arg9: memref<2x32x32xf32, #tpu.memory_space<vmem>>, %arg10: memref<2x64x32xf32, #tpu.memory_space<vmem>>, %arg11: memref<2x32x32xf32, #tpu.memory_space<vmem>>, %arg12: memref<2x32x32xf32, #tpu.memory_space<vmem>>, %arg13: memref<2x32x32xf32, #tpu.memory_space<vmem>>, %arg14: memref<2x6x32xf32, #tpu.memory_space<vmem>>, %arg15: memref<2x128xf32, #tpu.memory_space<vmem>>, %arg16: memref<16x32xf32, #tpu.memory_space<vmem>>) attributes {dimension_semantics = [#tpu.dimension_semantics<parallel>], iteration_bounds = array<i64: 1>, scalar_prefetch = 0 : i64, scratch_operands = 1 : i64, tpu.core_type = #tpu.core_type<tc>, window_params = [{transform_indices = @transform_0, window_bounds = array<i64: 2, 8, 8>}, {transform_indices = @transform_1, window_bounds = array<i64: 2, 8, 1>}, {pipeline_mode = #tpu.pipeline_mode<synchronous>, transform_indices = @transform_2, window_bounds = array<i64: 1, 32>}, {pipeline_mode = #tpu.pipeline_mode<synchronous>, transform_indices = @transform_3, window_bounds = array<i64: 32, 4>}, {pipeline_mode = #tpu.pipeline_mode<synchronous>, transform_indices = @transform_4, window_bounds = array<i64: 32, 8>}, {pipeline_mode = #tpu.pipeline_mode<synchronous>, transform_indices = @transform_5, window_bounds = array<i64: 32, 32>}, {pipeline_mode = #tpu.pipeline_mode<synchronous>, transform_indices = @transform_6, window_bounds = array<i64: 96, 32>}, {pipeline_mode = #tpu.pipeline_mode<synchronous>, transform_indices = @transform_7, window_bounds = array<i64: 2, 32, 32>}, {pipeline_mode = #tpu.pipeline_mode<synchronous>, transform_indices = @transform_8, window_bounds = array<i64: 2, 32, 32>}, {pipeline_mode = #tpu.pipeline_mode<synchronous>, transform_indices = @transform_9, window_bounds = array<i64: 2, 64, 32>}, {pipeline_mode = #tpu.pipeline_mode<synchronous>, transform_indices = @transform_10, window_bounds = array<i64: 2, 32, 32>}, {pipeline_mode = #tpu.pipeline_mode<synchronous>, transform_indices = @transform_11, window_bounds = array<i64: 2, 32, 32>}, {pipeline_mode = #tpu.pipeline_mode<synchronous>, transform_indices = @transform_12, window_bounds = array<i64: 2, 32, 32>}, {pipeline_mode = #tpu.pipeline_mode<synchronous>, transform_indices = @transform_13, window_bounds = array<i64: 2, 6, 32>}, {transform_indices = @transform_14, window_bounds = array<i64: 2, 128>}]} {
    %c0 = arith.constant 0 : index
    %c0_0 = arith.constant 0 : index
    %c0_1 = arith.constant 0 : index
    %0 = vector.load %arg1[%c0, %c0_0, %c0_1] : memref<2x8x8xf32, #tpu.memory_space<vmem>>, vector<2x8x8xf32>
    %1 = vector.shape_cast %0 : vector<2x8x8xf32> to vector<16x8xf32>
    %c0_2 = arith.constant 0 : index
    %c0_3 = arith.constant 0 : index
    %2 = vector.load %arg5[%c0_2, %c0_3] : memref<32x8xf32, #tpu.memory_space<vmem>>, vector<32x8xf32>
    %cst = arith.constant dense<0.000000e+00> : vector<16x32xf32>
    %3 = tpu.matmul %1, %2, %cst {dimension_numbers = #tpu.dot_dimension_numbers<[1], [1], [0], [0], [0, 0, 1, 0], [], []>} : vector<16x8xf32>, vector<32x8xf32>, vector<16x32xf32> -> vector<16x32xf32>
    %cst_4 = arith.constant 0.000000e+00 : f32
    %4 = vector.broadcast %cst_4 : f32 to vector<16x32xf32>
    %5 = arith.cmpf oge, %3, %4 : vector<16x32xf32>
    %cst_5 = arith.constant 0.00999999977 : f32
    %6 = vector.broadcast %cst_5 : f32 to vector<16x32xf32>
    %7 = arith.mulf %6, %3 : vector<16x32xf32>
    %8 = arith.select %5, %3, %7 : vector<16x32xi1>, vector<16x32xf32>
    %c0_6 = arith.constant 0 : index
    %c0_7 = arith.constant 0 : index
    %9 = vector.load %arg16[%c0_6, %c0_7] : memref<16x32xf32, #tpu.memory_space<vmem>>, vector<16x32xf32>
    tpu.vector_store %arg16[%c0_6, %c0_7], %8 {strides = array<i32>} : memref<16x32xf32, #tpu.memory_space<vmem>>, vector<16x32xf32>,
    %c0_8 = arith.constant 0 : index
    %c0_9 = arith.constant 0 : index
    %10 = vector.load %arg4[%c0_8, %c0_9] : memref<32x4xf32, #tpu.memory_space<vmem>>, vector<32x4xf32>
    %c0_10 = arith.constant 0 : index
    %c0_11 = arith.constant 0 : index
    %c0_12 = arith.constant 0 : index
    %11 = vector.load %arg2[%c0_10, %c0_11, %c0_12] : memref<2x8x1xf32, #tpu.memory_space<vmem>>, vector<2x8x1xf32>
    %c0_13 = arith.constant 0 : index
    %c0_14 = arith.constant 0 : index
    %12 = vector.load %arg3[%c0_13, %c0_14] : memref<1x32xf32, #tpu.memory_space<vmem>>, vector<1x32xf32>
    %13 = vector.shape_cast %12 : vector<1x32xf32> to vector<1x32xf32>
    %14 = vector.broadcast %13 : vector<1x32xf32> to vector<2x32xf32>
    %c0_15 = arith.constant 0 : index
    %c0_16 = arith.constant 0 : index
    %c0_17 = arith.constant 0 : index
    %15 = vector.load %arg14[%c0_15, %c0_16, %c0_17] : memref<2x6x32xf32, #tpu.memory_space<vmem>>, vector<1x6x32xf32>
    %16 = vector.shape_cast %15 : vector<1x6x32xf32> to vector<6x32xf32>
    %c0_18 = arith.constant 0 : index
    %c0_19 = arith.constant 0 : index
    %17 = vector.load %arg16[%c0_18, %c0_19] : memref<16x32xf32, #tpu.memory_space<vmem>>, vector<16x32xf32>
    %c0_20 = arith.constant 0 : index
    %c0_21 = arith.constant 0 : index
    %c0_22 = arith.constant 0 : index
    %18 = vector.load %arg8[%c0_20, %c0_21, %c0_22] : memref<2x32x32xf32, #tpu.memory_space<vmem>>, vector<1x32x32xf32>
    %19 = vector.shape_cast %18 : vector<1x32x32xf32> to vector<32x32xf32>
    %cst_23 = arith.constant dense<0.000000e+00> : vector<16x32xf32>
    %20 = tpu.matmul %17, %19, %cst_23 {dimension_numbers = #tpu.dot_dimension_numbers<[1], [1], [0], [0], [0, 0, 1, 0], [], []>} : vector<16x32xf32>, vector<32x32xf32>, vector<16x32xf32> -> vector<16x32xf32>
    %cst_24 = arith.constant 0.000000e+00 : f32
    %21 = vector.broadcast %cst_24 : f32 to vector<16x32xf32>
    %22 = arith.cmpf oge, %20, %21 : vector<16x32xf32>
    %cst_25 = arith.constant 0.00999999977 : f32
    %23 = vector.broadcast %cst_25 : f32 to vector<16x32xf32>
    %24 = arith.mulf %23, %20 : vector<16x32xf32>
    %25 = arith.select %22, %20, %24 : vector<16x32xi1>, vector<16x32xf32>
    %c0_26 = arith.constant 0 : index
    %c0_27 = arith.constant 0 : index
    %c0_28 = arith.constant 0 : index
    %26 = vector.load %arg9[%c0_26, %c0_27, %c0_28] : memref<2x32x32xf32, #tpu.memory_space<vmem>>, vector<1x32x32xf32>
    %27 = vector.shape_cast %26 : vector<1x32x32xf32> to vector<32x32xf32>
    %cst_29 = arith.constant dense<0.000000e+00> : vector<2x32xf32>
    %28 = tpu.matmul %14, %27, %cst_29 {dimension_numbers = #tpu.dot_dimension_numbers<[1], [1], [0], [0], [0, 0, 1, 0], [], []>} : vector<2x32xf32>, vector<32x32xf32>, vector<2x32xf32> -> vector<2x32xf32>
    %29 = vector.extract_strided_slice %16 {offsets = [0, 0], sizes = [1, 32], strides = [1, 1]} : vector<6x32xf32> to vector<1x32xf32>
    %30 = vector.broadcast %29 : vector<1x32xf32> to vector<2x32xf32>
    %31 = arith.addf %28, %30 : vector<2x32xf32>
    %c0_30 = arith.constant 0 : index
    %c0_31 = arith.constant 0 : index
    %c0_32 = arith.constant 0 : index
    %32 = vector.load %arg10[%c0_30, %c0_31, %c0_32] : memref<2x64x32xf32, #tpu.memory_space<vmem>>, vector<1x64x32xf32>
    %33 = vector.shape_cast %32 : vector<1x64x32xf32> to vector<64x32xf32>
    %cst_33 = arith.constant dense<0.000000e+00> : vector<16x64xf32>
    %34 = tpu.matmul %25, %33, %cst_33 {dimension_numbers = #tpu.dot_dimension_numbers<[1], [1], [0], [0], [0, 0, 1, 0], [], []>} : vector<16x32xf32>, vector<64x32xf32>, vector<16x64xf32> -> vector<16x64xf32>
    %35 = vector.extract_strided_slice %34 {offsets = [0, 0], sizes = [16, 32], strides = [1, 1]} : vector<16x64xf32> to vector<16x32xf32>
    %36 = vector.extract_strided_slice %16 {offsets = [1, 0], sizes = [1, 32], strides = [1, 1]} : vector<6x32xf32> to vector<1x32xf32>
    %37 = vector.broadcast %36 : vector<1x32xf32> to vector<16x32xf32>
    %38 = arith.addf %35, %37 : vector<16x32xf32>
    %39 = vector.extract_strided_slice %34 {offsets = [0, 32], sizes = [16, 32], strides = [1, 1]} : vector<16x64xf32> to vector<16x32xf32>
    %40 = vector.extract_strided_slice %16 {offsets = [2, 0], sizes = [1, 32], strides = [1, 1]} : vector<6x32xf32> to vector<1x32xf32>
    %41 = vector.broadcast %40 : vector<1x32xf32> to vector<16x32xf32>
    %42 = arith.addf %39, %41 : vector<16x32xf32>
    %43 = vector.shape_cast %38 : vector<16x32xf32> to vector<2x8x32xf32>
    %44 = vector.shape_cast %31 : vector<2x32xf32> to vector<2x1x32xf32>
    %45 = vector.broadcast %44 : vector<2x1x32xf32> to vector<2x8x32xf32>
    %46 = arith.mulf %43, %45 : vector<2x8x32xf32>
    %47 = vector.shape_cast %46 : vector<2x8x32xf32> to vector<16x32xf32>
    %cst_34 = arith.constant dense<0.000000e+00> : vector<16x4xf32>
    %48 = tpu.matmul %47, %10, %cst_34 {dimension_numbers = #tpu.dot_dimension_numbers<[1], [0], [0], [1], [0, 0, 1, 1], [], []>} : vector<16x32xf32>, vector<32x4xf32>, vector<16x4xf32> -> vector<16x4xf32>
    %cst_35 = arith.constant 0.353553385 : f32
    %49 = vector.broadcast %cst_35 : f32 to vector<16x4xf32>
    %50 = arith.mulf %48, %49 : vector<16x4xf32>
    %51 = vector.shape_cast %50 : vector<16x4xf32> to vector<2x8x4xf32>
    %52 = vector.broadcast %11 : vector<2x8x1xf32> to vector<2x8x4xf32>
    %53 = arith.addf %51, %52 : vector<2x8x4xf32>
    %cst_36 = arith.constant dense<0xFF800000> : vector<2x4xf32>
    %54 = vector.multi_reduction <maximumf>, %53, %cst_36 [1] : vector<2x8x4xf32> to vector<2x4xf32>
    %55 = vector.shape_cast %54 : vector<2x4xf32> to vector<2x1x4xf32>
    %56 = vector.broadcast %55 : vector<2x1x4xf32> to vector<2x8x4xf32>
    %57 = arith.subf %53, %56 : vector<2x8x4xf32>
    %58 = math.exp %57 : vector<2x8x4xf32>
    %cst_37 = arith.constant dense<0.000000e+00> : vector<2x4xf32>
    %59 = vector.multi_reduction <add>, %58, %cst_37 [1] : vector<2x8x4xf32> to vector<2x4xf32>
    %60 = vector.shape_cast %59 : vector<2x4xf32> to vector<2x1x4xf32>
    %61 = vector.broadcast %60 : vector<2x1x4xf32> to vector<2x8x4xf32>
    %62 = arith.divf %58, %61 : vector<2x8x4xf32>
    %63 = vector.shape_cast %62 : vector<2x8x4xf32> to vector<16x4xf32>
    %cst_38 = arith.constant dense<0.000000e+00> : vector<16x32xf32>
    %64 = tpu.matmul %63, %10, %cst_38 {dimension_numbers = #tpu.dot_dimension_numbers<[1], [1], [0], [0], [0, 0, 1, 0], [], []>} : vector<16x4xf32>, vector<32x4xf32>, vector<16x32xf32> -> vector<16x32xf32>
    %65 = arith.mulf %64, %42 : vector<16x32xf32>
    %66 = vector.shape_cast %65 : vector<16x32xf32> to vector<2x8x32xf32>
    %cst_39 = arith.constant dense<0.000000e+00> : vector<2x32xf32>
    %67 = vector.multi_reduction <add>, %66, %cst_39 [1] : vector<2x8x32xf32> to vector<2x32xf32>
    %c0_40 = arith.constant 0 : index
    %c0_41 = arith.constant 0 : index
    %c0_42 = arith.constant 0 : index
    %68 = vector.load %arg11[%c0_40, %c0_41, %c0_42] : memref<2x32x32xf32, #tpu.memory_space<vmem>>, vector<1x32x32xf32>
    %69 = vector.shape_cast %68 : vector<1x32x32xf32> to vector<32x32xf32>
    %cst_43 = arith.constant dense<0.000000e+00> : vector<2x32xf32>
    %70 = tpu.matmul %67, %69, %cst_43 {dimension_numbers = #tpu.dot_dimension_numbers<[1], [1], [0], [0], [0, 0, 1, 0], [], []>} : vector<2x32xf32>, vector<32x32xf32>, vector<2x32xf32> -> vector<2x32xf32>
    %71 = vector.extract_strided_slice %16 {offsets = [3, 0], sizes = [1, 32], strides = [1, 1]} : vector<6x32xf32> to vector<1x32xf32>
    %72 = vector.broadcast %71 : vector<1x32xf32> to vector<2x32xf32>
    %73 = arith.addf %70, %72 : vector<2x32xf32>
    %c0_44 = arith.constant 0 : index
    %c0_45 = arith.constant 0 : index
    %c0_46 = arith.constant 0 : index
    %74 = vector.load %arg12[%c0_44, %c0_45, %c0_46] : memref<2x32x32xf32, #tpu.memory_space<vmem>>, vector<1x32x32xf32>
    %75 = vector.shape_cast %74 : vector<1x32x32xf32> to vector<32x32xf32>
    %cst_47 = arith.constant dense<0.000000e+00> : vector<2x32xf32>
    %76 = tpu.matmul %73, %75, %cst_47 {dimension_numbers = #tpu.dot_dimension_numbers<[1], [1], [0], [0], [0, 0, 1, 0], [], []>} : vector<2x32xf32>, vector<32x32xf32>, vector<2x32xf32> -> vector<2x32xf32>
    %cst_48 = arith.constant 0.000000e+00 : f32
    %77 = vector.broadcast %cst_48 : f32 to vector<2x32xf32>
    %78 = arith.cmpf oge, %76, %77 : vector<2x32xf32>
    %cst_49 = arith.constant 0.00999999977 : f32
    %79 = vector.broadcast %cst_49 : f32 to vector<2x32xf32>
    %80 = arith.mulf %79, %76 : vector<2x32xf32>
    %81 = arith.select %78, %76, %80 : vector<2x32xi1>, vector<2x32xf32>
    %82 = arith.addf %81, %14 : vector<2x32xf32>
    %cst_50 = arith.constant dense<0.000000e+00> : vector<2xf32>
    %83 = vector.multi_reduction <add>, %82, %cst_50 [1] : vector<2x32xf32> to vector<2xf32>
    %84 = vector.shape_cast %83 : vector<2xf32> to vector<2x1xf32>
    %cst_51 = arith.constant 3.200000e+01 : f32
    %85 = vector.broadcast %cst_51 : f32 to vector<2x1xf32>
    %86 = arith.divf %84, %85 : vector<2x1xf32>
    %87 = vector.broadcast %86 : vector<2x1xf32> to vector<2x32xf32>
    %88 = arith.subf %82, %87 : vector<2x32xf32>
    %89 = arith.mulf %88, %88 : vector<2x32xf32>
    %cst_52 = arith.constant dense<0.000000e+00> : vector<2xf32>
    %90 = vector.multi_reduction <add>, %89, %cst_52 [1] : vector<2x32xf32> to vector<2xf32>
    %91 = vector.shape_cast %90 : vector<2xf32> to vector<2x1xf32>
    %cst_53 = arith.constant 3.200000e+01 : f32
    %92 = vector.broadcast %cst_53 : f32 to vector<2x1xf32>
    %93 = arith.divf %91, %92 : vector<2x1xf32>
    %94 = vector.broadcast %86 : vector<2x1xf32> to vector<2x32xf32>
    %95 = arith.subf %82, %94 : vector<2x32xf32>
    %cst_54 = arith.constant 9.99999974E-6 : f32
    %96 = vector.broadcast %cst_54 : f32 to vector<2x1xf32>
    %97 = arith.addf %93, %96 : vector<2x1xf32>
    %98 = math.rsqrt %97 : vector<2x1xf32>
    %99 = vector.broadcast %98 : vector<2x1xf32> to vector<2x32xf32>
    %100 = arith.mulf %95, %99 : vector<2x32xf32>
    %101 = vector.extract_strided_slice %16 {offsets = [4, 0], sizes = [1, 32], strides = [1, 1]} : vector<6x32xf32> to vector<1x32xf32>
    %102 = vector.broadcast %101 : vector<1x32xf32> to vector<2x32xf32>
    %103 = arith.mulf %100, %102 : vector<2x32xf32>
    %104 = vector.extract_strided_slice %16 {offsets = [5, 0], sizes = [1, 32], strides = [1, 1]} : vector<6x32xf32> to vector<1x32xf32>
    %105 = vector.broadcast %104 : vector<1x32xf32> to vector<2x32xf32>
    %106 = arith.addf %103, %105 : vector<2x32xf32>
    %c0_55 = arith.constant 0 : index
    %c0_56 = arith.constant 0 : index
    %c0_57 = arith.constant 0 : index
    %107 = vector.load %arg13[%c0_55, %c0_56, %c0_57] : memref<2x32x32xf32, #tpu.memory_space<vmem>>, vector<1x32x32xf32>
    %108 = vector.shape_cast %107 : vector<1x32x32xf32> to vector<32x32xf32>
    %cst_58 = arith.constant dense<0.000000e+00> : vector<2x32xf32>
    %109 = tpu.matmul %106, %108, %cst_58 {dimension_numbers = #tpu.dot_dimension_numbers<[1], [1], [0], [0], [0, 0, 1, 0], [], []>} : vector<2x32xf32>, vector<32x32xf32>, vector<2x32xf32> -> vector<2x32xf32>
    %cst_59 = arith.constant 0.000000e+00 : f32
    %110 = vector.broadcast %cst_59 : f32 to vector<2x32xf32>
    %111 = arith.cmpf oge, %109, %110 : vector<2x32xf32>
    %cst_60 = arith.constant 0.00999999977 : f32
    %112 = vector.broadcast %cst_60 : f32 to vector<2x32xf32>
    %113 = arith.mulf %112, %109 : vector<2x32xf32>
    %114 = arith.select %111, %109, %113 : vector<2x32xi1>, vector<2x32xf32>
    %c1 = arith.constant 1 : index
    %c0_61 = arith.constant 0 : index
    %c0_62 = arith.constant 0 : index
    %115 = vector.load %arg14[%c1, %c0_61, %c0_62] : memref<2x6x32xf32, #tpu.memory_space<vmem>>, vector<1x6x32xf32>
    %116 = vector.shape_cast %115 : vector<1x6x32xf32> to vector<6x32xf32>
    %c0_63 = arith.constant 0 : index
    %c0_64 = arith.constant 0 : index
    %117 = vector.load %arg16[%c0_63, %c0_64] : memref<16x32xf32, #tpu.memory_space<vmem>>, vector<16x32xf32>
    %c1_65 = arith.constant 1 : index
    %c0_66 = arith.constant 0 : index
    %c0_67 = arith.constant 0 : index
    %118 = vector.load %arg8[%c1_65, %c0_66, %c0_67] : memref<2x32x32xf32, #tpu.memory_space<vmem>>, vector<1x32x32xf32>
    %119 = vector.shape_cast %118 : vector<1x32x32xf32> to vector<32x32xf32>
    %cst_68 = arith.constant dense<0.000000e+00> : vector<16x32xf32>
    %120 = tpu.matmul %117, %119, %cst_68 {dimension_numbers = #tpu.dot_dimension_numbers<[1], [1], [0], [0], [0, 0, 1, 0], [], []>} : vector<16x32xf32>, vector<32x32xf32>, vector<16x32xf32> -> vector<16x32xf32>
    %cst_69 = arith.constant 0.000000e+00 : f32
    %121 = vector.broadcast %cst_69 : f32 to vector<16x32xf32>
    %122 = arith.cmpf oge, %120, %121 : vector<16x32xf32>
    %cst_70 = arith.constant 0.00999999977 : f32
    %123 = vector.broadcast %cst_70 : f32 to vector<16x32xf32>
    %124 = arith.mulf %123, %120 : vector<16x32xf32>
    %125 = arith.select %122, %120, %124 : vector<16x32xi1>, vector<16x32xf32>
    %c1_71 = arith.constant 1 : index
    %c0_72 = arith.constant 0 : index
    %c0_73 = arith.constant 0 : index
    %126 = vector.load %arg9[%c1_71, %c0_72, %c0_73] : memref<2x32x32xf32, #tpu.memory_space<vmem>>, vector<1x32x32xf32>
    %127 = vector.shape_cast %126 : vector<1x32x32xf32> to vector<32x32xf32>
    %cst_74 = arith.constant dense<0.000000e+00> : vector<2x32xf32>
    %128 = tpu.matmul %114, %127, %cst_74 {dimension_numbers = #tpu.dot_dimension_numbers<[1], [1], [0], [0], [0, 0, 1, 0], [], []>} : vector<2x32xf32>, vector<32x32xf32>, vector<2x32xf32> -> vector<2x32xf32>
    %129 = vector.extract_strided_slice %116 {offsets = [0, 0], sizes = [1, 32], strides = [1, 1]} : vector<6x32xf32> to vector<1x32xf32>
    %130 = vector.broadcast %129 : vector<1x32xf32> to vector<2x32xf32>
    %131 = arith.addf %128, %130 : vector<2x32xf32>
    %c1_75 = arith.constant 1 : index
    %c0_76 = arith.constant 0 : index
    %c0_77 = arith.constant 0 : index
    %132 = vector.load %arg10[%c1_75, %c0_76, %c0_77] : memref<2x64x32xf32, #tpu.memory_space<vmem>>, vector<1x64x32xf32>
    %133 = vector.shape_cast %132 : vector<1x64x32xf32> to vector<64x32xf32>
    %cst_78 = arith.constant dense<0.000000e+00> : vector<16x64xf32>
    %134 = tpu.matmul %125, %133, %cst_78 {dimension_numbers = #tpu.dot_dimension_numbers<[1], [1], [0], [0], [0, 0, 1, 0], [], []>} : vector<16x32xf32>, vector<64x32xf32>, vector<16x64xf32> -> vector<16x64xf32>
    %135 = vector.extract_strided_slice %134 {offsets = [0, 0], sizes = [16, 32], strides = [1, 1]} : vector<16x64xf32> to vector<16x32xf32>
    %136 = vector.extract_strided_slice %116 {offsets = [1, 0], sizes = [1, 32], strides = [1, 1]} : vector<6x32xf32> to vector<1x32xf32>
    %137 = vector.broadcast %136 : vector<1x32xf32> to vector<16x32xf32>
    %138 = arith.addf %135, %137 : vector<16x32xf32>
    %139 = vector.extract_strided_slice %134 {offsets = [0, 32], sizes = [16, 32], strides = [1, 1]} : vector<16x64xf32> to vector<16x32xf32>
    %140 = vector.extract_strided_slice %116 {offsets = [2, 0], sizes = [1, 32], strides = [1, 1]} : vector<6x32xf32> to vector<1x32xf32>
    %141 = vector.broadcast %140 : vector<1x32xf32> to vector<16x32xf32>
    %142 = arith.addf %139, %141 : vector<16x32xf32>
    %143 = vector.shape_cast %138 : vector<16x32xf32> to vector<2x8x32xf32>
    %144 = vector.shape_cast %131 : vector<2x32xf32> to vector<2x1x32xf32>
    %145 = vector.broadcast %144 : vector<2x1x32xf32> to vector<2x8x32xf32>
    %146 = arith.mulf %143, %145 : vector<2x8x32xf32>
    %147 = vector.shape_cast %146 : vector<2x8x32xf32> to vector<16x32xf32>
    %cst_79 = arith.constant dense<0.000000e+00> : vector<16x4xf32>
    %148 = tpu.matmul %147, %10, %cst_79 {dimension_numbers = #tpu.dot_dimension_numbers<[1], [0], [0], [1], [0, 0, 1, 1], [], []>} : vector<16x32xf32>, vector<32x4xf32>, vector<16x4xf32> -> vector<16x4xf32>
    %cst_80 = arith.constant 0.353553385 : f32
    %149 = vector.broadcast %cst_80 : f32 to vector<16x4xf32>
    %150 = arith.mulf %148, %149 : vector<16x4xf32>
    %151 = vector.shape_cast %150 : vector<16x4xf32> to vector<2x8x4xf32>
    %152 = vector.broadcast %11 : vector<2x8x1xf32> to vector<2x8x4xf32>
    %153 = arith.addf %151, %152 : vector<2x8x4xf32>
    %cst_81 = arith.constant dense<0xFF800000> : vector<2x4xf32>
    %154 = vector.multi_reduction <maximumf>, %153, %cst_81 [1] : vector<2x8x4xf32> to vector<2x4xf32>
    %155 = vector.shape_cast %154 : vector<2x4xf32> to vector<2x1x4xf32>
    %156 = vector.broadcast %155 : vector<2x1x4xf32> to vector<2x8x4xf32>
    %157 = arith.subf %153, %156 : vector<2x8x4xf32>
    %158 = math.exp %157 : vector<2x8x4xf32>
    %cst_82 = arith.constant dense<0.000000e+00> : vector<2x4xf32>
    %159 = vector.multi_reduction <add>, %158, %cst_82 [1] : vector<2x8x4xf32> to vector<2x4xf32>
    %160 = vector.shape_cast %159 : vector<2x4xf32> to vector<2x1x4xf32>
    %161 = vector.broadcast %160 : vector<2x1x4xf32> to vector<2x8x4xf32>
    %162 = arith.divf %158, %161 : vector<2x8x4xf32>
    %163 = vector.shape_cast %162 : vector<2x8x4xf32> to vector<16x4xf32>
    %cst_83 = arith.constant dense<0.000000e+00> : vector<16x32xf32>
    %164 = tpu.matmul %163, %10, %cst_83 {dimension_numbers = #tpu.dot_dimension_numbers<[1], [1], [0], [0], [0, 0, 1, 0], [], []>} : vector<16x4xf32>, vector<32x4xf32>, vector<16x32xf32> -> vector<16x32xf32>
    %165 = arith.mulf %164, %142 : vector<16x32xf32>
    %166 = vector.shape_cast %165 : vector<16x32xf32> to vector<2x8x32xf32>
    %cst_84 = arith.constant dense<0.000000e+00> : vector<2x32xf32>
    %167 = vector.multi_reduction <add>, %166, %cst_84 [1] : vector<2x8x32xf32> to vector<2x32xf32>
    %c1_85 = arith.constant 1 : index
    %c0_86 = arith.constant 0 : index
    %c0_87 = arith.constant 0 : index
    %168 = vector.load %arg11[%c1_85, %c0_86, %c0_87] : memref<2x32x32xf32, #tpu.memory_space<vmem>>, vector<1x32x32xf32>
    %169 = vector.shape_cast %168 : vector<1x32x32xf32> to vector<32x32xf32>
    %cst_88 = arith.constant dense<0.000000e+00> : vector<2x32xf32>
    %170 = tpu.matmul %167, %169, %cst_88 {dimension_numbers = #tpu.dot_dimension_numbers<[1], [1], [0], [0], [0, 0, 1, 0], [], []>} : vector<2x32xf32>, vector<32x32xf32>, vector<2x32xf32> -> vector<2x32xf32>
    %171 = vector.extract_strided_slice %116 {offsets = [3, 0], sizes = [1, 32], strides = [1, 1]} : vector<6x32xf32> to vector<1x32xf32>
    %172 = vector.broadcast %171 : vector<1x32xf32> to vector<2x32xf32>
    %173 = arith.addf %170, %172 : vector<2x32xf32>
    %c1_89 = arith.constant 1 : index
    %c0_90 = arith.constant 0 : index
    %c0_91 = arith.constant 0 : index
    %174 = vector.load %arg12[%c1_89, %c0_90, %c0_91] : memref<2x32x32xf32, #tpu.memory_space<vmem>>, vector<1x32x32xf32>
    %175 = vector.shape_cast %174 : vector<1x32x32xf32> to vector<32x32xf32>
    %cst_92 = arith.constant dense<0.000000e+00> : vector<2x32xf32>
    %176 = tpu.matmul %173, %175, %cst_92 {dimension_numbers = #tpu.dot_dimension_numbers<[1], [1], [0], [0], [0, 0, 1, 0], [], []>} : vector<2x32xf32>, vector<32x32xf32>, vector<2x32xf32> -> vector<2x32xf32>
    %cst_93 = arith.constant 0.000000e+00 : f32
    %177 = vector.broadcast %cst_93 : f32 to vector<2x32xf32>
    %178 = arith.cmpf oge, %176, %177 : vector<2x32xf32>
    %cst_94 = arith.constant 0.00999999977 : f32
    %179 = vector.broadcast %cst_94 : f32 to vector<2x32xf32>
    %180 = arith.mulf %179, %176 : vector<2x32xf32>
    %181 = arith.select %178, %176, %180 : vector<2x32xi1>, vector<2x32xf32>
    %182 = arith.addf %181, %114 : vector<2x32xf32>
    %cst_95 = arith.constant dense<0.000000e+00> : vector<2xf32>
    %183 = vector.multi_reduction <add>, %182, %cst_95 [1] : vector<2x32xf32> to vector<2xf32>
    %184 = vector.shape_cast %183 : vector<2xf32> to vector<2x1xf32>
    %cst_96 = arith.constant 3.200000e+01 : f32
    %185 = vector.broadcast %cst_96 : f32 to vector<2x1xf32>
    %186 = arith.divf %184, %185 : vector<2x1xf32>
    %187 = vector.broadcast %186 : vector<2x1xf32> to vector<2x32xf32>
    %188 = arith.subf %182, %187 : vector<2x32xf32>
    %189 = arith.mulf %188, %188 : vector<2x32xf32>
    %cst_97 = arith.constant dense<0.000000e+00> : vector<2xf32>
    %190 = vector.multi_reduction <add>, %189, %cst_97 [1] : vector<2x32xf32> to vector<2xf32>
    %191 = vector.shape_cast %190 : vector<2xf32> to vector<2x1xf32>
    %cst_98 = arith.constant 3.200000e+01 : f32
    %192 = vector.broadcast %cst_98 : f32 to vector<2x1xf32>
    %193 = arith.divf %191, %192 : vector<2x1xf32>
    %194 = vector.broadcast %186 : vector<2x1xf32> to vector<2x32xf32>
    %195 = arith.subf %182, %194 : vector<2x32xf32>
    %cst_99 = arith.constant 9.99999974E-6 : f32
    %196 = vector.broadcast %cst_99 : f32 to vector<2x1xf32>
    %197 = arith.addf %193, %196 : vector<2x1xf32>
    %198 = math.rsqrt %197 : vector<2x1xf32>
    %199 = vector.broadcast %198 : vector<2x1xf32> to vector<2x32xf32>
    %200 = arith.mulf %195, %199 : vector<2x32xf32>
    %201 = vector.extract_strided_slice %116 {offsets = [4, 0], sizes = [1, 32], strides = [1, 1]} : vector<6x32xf32> to vector<1x32xf32>
    %202 = vector.broadcast %201 : vector<1x32xf32> to vector<2x32xf32>
    %203 = arith.mulf %200, %202 : vector<2x32xf32>
    %204 = vector.extract_strided_slice %116 {offsets = [5, 0], sizes = [1, 32], strides = [1, 1]} : vector<6x32xf32> to vector<1x32xf32>
    %205 = vector.broadcast %204 : vector<1x32xf32> to vector<2x32xf32>
    %206 = arith.addf %203, %205 : vector<2x32xf32>
    %c1_100 = arith.constant 1 : index
    %c0_101 = arith.constant 0 : index
    %c0_102 = arith.constant 0 : index
    %207 = vector.load %arg13[%c1_100, %c0_101, %c0_102] : memref<2x32x32xf32, #tpu.memory_space<vmem>>, vector<1x32x32xf32>
    %208 = vector.shape_cast %207 : vector<1x32x32xf32> to vector<32x32xf32>
    %cst_103 = arith.constant dense<0.000000e+00> : vector<2x32xf32>
    %209 = tpu.matmul %206, %208, %cst_103 {dimension_numbers = #tpu.dot_dimension_numbers<[1], [1], [0], [0], [0, 0, 1, 0], [], []>} : vector<2x32xf32>, vector<32x32xf32>, vector<2x32xf32> -> vector<2x32xf32>
    %cst_104 = arith.constant 0.000000e+00 : f32
    %210 = vector.broadcast %cst_104 : f32 to vector<2x32xf32>
    %211 = arith.cmpf oge, %209, %210 : vector<2x32xf32>
    %cst_105 = arith.constant 0.00999999977 : f32
    %212 = vector.broadcast %cst_105 : f32 to vector<2x32xf32>
    %213 = arith.mulf %212, %209 : vector<2x32xf32>
    %214 = arith.select %211, %209, %213 : vector<2x32xi1>, vector<2x32xf32>
    %c0_106 = arith.constant 0 : index
    %c0_107 = arith.constant 0 : index
    %215 = vector.load %arg6[%c0_106, %c0_107] : memref<32x32xf32, #tpu.memory_space<vmem>>, vector<32x32xf32>
    %cst_108 = arith.constant dense<0.000000e+00> : vector<2x32xf32>
    %216 = tpu.matmul %214, %215, %cst_108 {dimension_numbers = #tpu.dot_dimension_numbers<[1], [1], [0], [0], [0, 0, 1, 0], [], []>} : vector<2x32xf32>, vector<32x32xf32>, vector<2x32xf32> -> vector<2x32xf32>
    %cst_109 = arith.constant 0.000000e+00 : f32
    %217 = vector.broadcast %cst_109 : f32 to vector<2x32xf32>
    %218 = arith.cmpf oge, %216, %217 : vector<2x32xf32>
    %cst_110 = arith.constant 0.00999999977 : f32
    %219 = vector.broadcast %cst_110 : f32 to vector<2x32xf32>
    %220 = arith.mulf %219, %216 : vector<2x32xf32>
    %221 = arith.select %218, %216, %220 : vector<2x32xi1>, vector<2x32xf32>
    %c0_111 = arith.constant 0 : index
    %c0_112 = arith.constant 0 : index
    %222 = vector.load %arg7[%c0_111, %c0_112] : memref<96x32xf32, #tpu.memory_space<vmem>>, vector<96x32xf32>
    %cst_113 = arith.constant dense<0.000000e+00> : vector<2x96xf32>
    %223 = tpu.matmul %221, %222, %cst_113 {dimension_numbers = #tpu.dot_dimension_numbers<[1], [1], [0], [0], [0, 0, 1, 0], [], []>} : vector<2x32xf32>, vector<96x32xf32>, vector<2x96xf32> -> vector<2x96xf32>
    %224 = tpu.concatenate %214, %223 in 1 : vector<2x32xf32>, vector<2x96xf32> -> vector<2x128xf32>
    %c0_114 = arith.constant 0 : index
    %c0_115 = arith.constant 0 : index
    %225 = vector.load %arg15[%c0_114, %c0_115] : memref<2x128xf32, #tpu.memory_space<vmem>>, vector<2x128xf32>
    tpu.vector_store %arg15[%c0_114, %c0_115], %224 {strides = array<i32>} : memref<2x128xf32, #tpu.memory_space<vmem>>, vector<2x128xf32>,
    return
  }
  func.func @transform_0(%arg0: i32) -> (i32, i32, i32) {
    %c0_i32 = arith.constant 0 : i32
    %c0_i32_0 = arith.constant 0 : i32
    %c0_i32_1 = arith.constant 0 : i32
    return %arg0, %c0_i32, %c0_i32_0 : i32, i32, i32
  }
  func.func @transform_1(%arg0: i32) -> (i32, i32, i32) {
    %c0_i32 = arith.constant 0 : i32
    %c0_i32_0 = arith.constant 0 : i32
    %c0_i32_1 = arith.constant 0 : i32
    return %arg0, %c0_i32, %c0_i32_0 : i32, i32, i32
  }
  func.func @transform_2(%arg0: i32) -> (i32, i32) {
    %c0_i32 = arith.constant 0 : i32
    %c0_i32_0 = arith.constant 0 : i32
    %c0_i32_1 = arith.constant 0 : i32
    return %c0_i32, %c0_i32_0 : i32, i32
  }
  func.func @transform_3(%arg0: i32) -> (i32, i32) {
    %c0_i32 = arith.constant 0 : i32
    %c0_i32_0 = arith.constant 0 : i32
    %c0_i32_1 = arith.constant 0 : i32
    return %c0_i32, %c0_i32_0 : i32, i32
  }
  func.func @transform_4(%arg0: i32) -> (i32, i32) {
    %c0_i32 = arith.constant 0 : i32
    %c0_i32_0 = arith.constant 0 : i32
    %c0_i32_1 = arith.constant 0 : i32
    return %c0_i32, %c0_i32_0 : i32, i32
  }
  func.func @transform_5(%arg0: i32) -> (i32, i32) {
    %c0_i32 = arith.constant 0 : i32
    %c0_i32_0 = arith.constant 0 : i32
    %c0_i32_1 = arith.constant 0 : i32
    return %c0_i32, %c0_i32_0 : i32, i32
  }
  func.func @transform_6(%arg0: i32) -> (i32, i32) {
    %c0_i32 = arith.constant 0 : i32
    %c0_i32_0 = arith.constant 0 : i32
    %c0_i32_1 = arith.constant 0 : i32
    return %c0_i32, %c0_i32_0 : i32, i32
  }
  func.func @transform_7(%arg0: i32) -> (i32, i32, i32) {
    %c0_i32 = arith.constant 0 : i32
    %c0_i32_0 = arith.constant 0 : i32
    %c0_i32_1 = arith.constant 0 : i32
    %c0_i32_2 = arith.constant 0 : i32
    return %c0_i32, %c0_i32_0, %c0_i32_1 : i32, i32, i32
  }
  func.func @transform_8(%arg0: i32) -> (i32, i32, i32) {
    %c0_i32 = arith.constant 0 : i32
    %c0_i32_0 = arith.constant 0 : i32
    %c0_i32_1 = arith.constant 0 : i32
    %c0_i32_2 = arith.constant 0 : i32
    return %c0_i32, %c0_i32_0, %c0_i32_1 : i32, i32, i32
  }
  func.func @transform_9(%arg0: i32) -> (i32, i32, i32) {
    %c0_i32 = arith.constant 0 : i32
    %c0_i32_0 = arith.constant 0 : i32
    %c0_i32_1 = arith.constant 0 : i32
    %c0_i32_2 = arith.constant 0 : i32
    return %c0_i32, %c0_i32_0, %c0_i32_1 : i32, i32, i32
  }
  func.func @transform_10(%arg0: i32) -> (i32, i32, i32) {
    %c0_i32 = arith.constant 0 : i32
    %c0_i32_0 = arith.constant 0 : i32
    %c0_i32_1 = arith.constant 0 : i32
    %c0_i32_2 = arith.constant 0 : i32
    return %c0_i32, %c0_i32_0, %c0_i32_1 : i32, i32, i32
  }
  func.func @transform_11(%arg0: i32) -> (i32, i32, i32) {
    %c0_i32 = arith.constant 0 : i32
    %c0_i32_0 = arith.constant 0 : i32
    %c0_i32_1 = arith.constant 0 : i32
    %c0_i32_2 = arith.constant 0 : i32
    return %c0_i32, %c0_i32_0, %c0_i32_1 : i32, i32, i32
  }
  func.func @transform_12(%arg0: i32) -> (i32, i32, i32) {
    %c0_i32 = arith.constant 0 : i32
    %c0_i32_0 = arith.constant 0 : i32
    %c0_i32_1 = arith.constant 0 : i32
    %c0_i32_2 = arith.constant 0 : i32
    return %c0_i32, %c0_i32_0, %c0_i32_1 : i32, i32, i32
  }
  func.func @transform_13(%arg0: i32) -> (i32, i32, i32) {
    %c0_i32 = arith.constant 0 : i32
    %c0_i32_0 = arith.constant 0 : i32
    %c0_i32_1 = arith.constant 0 : i32
    %c0_i32_2 = arith.constant 0 : i32
    return %c0_i32, %c0_i32_0, %c0_i32_1 : i32, i32, i32
  }
  func.func @transform_14(%arg0: i32) -> (i32, i32) {
    %c0_i32 = arith.constant 0 : i32
    %c0_i32_0 = arith.constant 0 : i32
    return %arg0, %c0_i32 : i32, i32
  }
}

</mosaic_0001>

<llo_original>
// kernel: disc_forward_pallas.1
$region0: #{disc_forward_pallas.1}
  #allocation0 [shape = 'u32[]', space=smem, size = 0x4, offset = 0x4, fixed_abs, tag = 'smem constant byte address 0x4 - core index']
  #allocation1 [shape = 'u32[144,128]{1,0:T(1,128)}', space=vmem, size = 0x12000, scoped, tag = 'internal scratch']
  #allocation2 [shape = 'f32[16,32]{1,0:T(8,128)}', space=vmem, size = 0x2000, scoped, tag = 'scratch operand']
  %s0 = inlined_call_operand.vmem [shape: f32[2,8,8], index: 0, kind: input, shape index: {}]
  %s1 = inlined_call_operand.vmem [shape: f32[2,8,1], index: 1, kind: input, shape index: {}]
  %s2 = inlined_call_operand.vmem [shape: f32[1,32], index: 2, kind: input, shape index: {}]
  %s3 = inlined_call_operand.vmem [shape: f32[32,4], index: 3, kind: input, shape index: {}]
  %s4 = inlined_call_operand.vmem [shape: f32[32,8], index: 4, kind: input, shape index: {}]
  %s5 = inlined_call_operand.vmem [shape: f32[32,32], index: 5, kind: input, shape index: {}]
  %s6 = inlined_call_operand.vmem [shape: f32[96,32], index: 6, kind: input, shape index: {}]
  %s7 = inlined_call_operand.vmem [shape: f32[2,32,32], index: 7, kind: input, shape index: {}]
  %s8 = inlined_call_operand.vmem [shape: f32[2,32,32], index: 8, kind: input, shape index: {}]
  %s9 = inlined_call_operand.vmem [shape: f32[2,64,32], index: 9, kind: input, shape index: {}]
  %s10 = inlined_call_operand.vmem [shape: f32[2,32,32], index: 10, kind: input, shape index: {}]
  %s11 = inlined_call_operand.vmem [shape: f32[2,32,32], index: 11, kind: input, shape index: {}]
  %s12 = inlined_call_operand.vmem [shape: f32[2,32,32], index: 12, kind: input, shape index: {}]
  %s13 = inlined_call_operand.vmem [shape: f32[2,6,32], index: 13, kind: input, shape index: {}]
  %s14 = inlined_call_operand.vmem [shape: f32[2,128], index: 14, kind: output, shape index: {}]
  %s15 = sld [smem:[#allocation0]]
  $region66: #{disc_forward_pallas.1} parent=0
    _
  %s17 = ssub.s32 1, %s15
  %s18 = scalar_select 0, %s17, %s15
  // Predicated region
  $region2: #{disc_forward_pallas.1} parent=0 // pred_check
    _
  $region3: #{disc_forward_pallas.1} parent=0 // pred_check_branch
    %20 = sbr.rel (0) target = $region5
  $region4: #{disc_forward_pallas.1} parent=0 // pred_region
    _
  $region5: #{disc_forward_pallas.1} parent=0 // pred_fallthru
    _
  // Predicated region
  $region6: #{disc_forward_pallas.1} parent=0 // pred_check
    _
  $region7: #{disc_forward_pallas.1} parent=0 // pred_check_branch
    %22 = sbr.rel (0) target = $region9
  $region8: #{disc_forward_pallas.1} parent=0 // pred_region
    _
  $region9: #{disc_forward_pallas.1} parent=0 // pred_fallthru
    _
  // Predicated region
  $region10: #{disc_forward_pallas.1} parent=0 // pred_check
    _
  $region11: #{disc_forward_pallas.1} parent=0 // pred_check_branch
    %24 = sbr.rel (0) target = $region13
  $region12: #{disc_forward_pallas.1} parent=0 // pred_region
    _
  $region13: #{disc_forward_pallas.1} parent=0 // pred_fallthru
    _
  // Predicated region
  $region14: #{disc_forward_pallas.1} parent=0 // pred_check
    _
  $region15: #{disc_forward_pallas.1} parent=0 // pred_check_branch
    %26 = sbr.rel (0) target = $region17
  $region16: #{disc_forward_pallas.1} parent=0 // pred_region
    _
  $region17: #{disc_forward_pallas.1} parent=0 // pred_fallthru
    _
  // Predicated region
  $region18: #{disc_forward_pallas.1} parent=0 // pred_check
    _
  $region19: #{disc_forward_pallas.1} parent=0 // pred_check_branch
    %28 = sbr.rel (0) target = $region21
  $region20: #{disc_forward_pallas.1} parent=0 // pred_region
    _
  $region21: #{disc_forward_pallas.1} parent=0 // pred_fallthru
    _
  // Predicated region
  $region22: #{disc_forward_pallas.1} parent=0 // pred_check
    _
  $region23: #{disc_forward_pallas.1} parent=0 // pred_check_branch
    %30 = sbr.rel (0) target = $region25
  $region24: #{disc_forward_pallas.1} parent=0 // pred_region
    _
  $region25: #{disc_forward_pallas.1} parent=0 // pred_fallthru
    _
  // Predicated region
  $region26: #{disc_forward_pallas.1} parent=0 // pred_check
    _
  $region27: #{disc_forward_pallas.1} parent=0 // pred_check_branch
    %32 = sbr.rel (0) target = $region29
  $region28: #{disc_forward_pallas.1} parent=0 // pred_region
    _
  $region29: #{disc_forward_pallas.1} parent=0 // pred_fallthru
    _
  // Predicated region
  $region30: #{disc_forward_pallas.1} parent=0 // pred_check
    _
  $region31: #{disc_forward_pallas.1} parent=0 // pred_check_branch
    %34 = sbr.rel (0) target = $region33
  $region32: #{disc_forward_pallas.1} parent=0 // pred_region
    _
  $region33: #{disc_forward_pallas.1} parent=0 // pred_fallthru
    _
  // Predicated region
  $region34: #{disc_forward_pallas.1} parent=0 // pred_check
    _
  $region35: #{disc_forward_pallas.1} parent=0 // pred_check_branch
    %36 = sbr.rel (0) target = $region37
  $region36: #{disc_forward_pallas.1} parent=0 // pred_region
    _
  $region37: #{disc_forward_pallas.1} parent=0 // pred_fallthru
    _
  // Predicated region
  $region38: #{disc_forward_pallas.1} parent=0 // pred_check
    _
  $region39: #{disc_forward_pallas.1} parent=0 // pred_check_branch
    %38 = sbr.rel (0) target = $region41
  $region40: #{disc_forward_pallas.1} parent=0 // pred_region
    _
  $region41: #{disc_forward_pallas.1} parent=0 // pred_fallthru
    _
  // Predicated region
  $region42: #{disc_forward_pallas.1} parent=0 // pred_check
    _
  $region43: #{disc_forward_pallas.1} parent=0 // pred_check_branch
    %40 = sbr.rel (0) target = $region45
  $region44: #{disc_forward_pallas.1} parent=0 // pred_region
    _
  $region45: #{disc_forward_pallas.1} parent=0 // pred_fallthru
    _
  // Predicated region
  $region46: #{disc_forward_pallas.1} parent=0 // pred_check
    _
  $region47: #{disc_forward_pallas.1} parent=0 // pred_check_branch
    %42 = sbr.rel (0) target = $region49
  $region48: #{disc_forward_pallas.1} parent=0 // pred_region
    _
  $region49: #{disc_forward_pallas.1} parent=0 // pred_fallthru
    _
  // Predicated region
  $region50: #{disc_forward_pallas.1} parent=0 // pred_check
    _
  $region51: #{disc_forward_pallas.1} parent=0 // pred_check_branch
    %44 = sbr.rel (0) target = $region53
  $region52: #{disc_forward_pallas.1} parent=0 // pred_region
    _
  $region53: #{disc_forward_pallas.1} parent=0 // pred_fallthru
    _
  // Predicated region
  $region54: #{disc_forward_pallas.1} parent=0 // pred_check
    _
  $region55: #{disc_forward_pallas.1} parent=0 // pred_check_branch
    %46 = sbr.rel (0) target = $region57
  $region56: #{disc_forward_pallas.1} parent=0 // pred_region
    _
  $region57: #{disc_forward_pallas.1} parent=0 // pred_fallthru
    _
  %v47 = vld [vmem:[%s0] sm:$0xff]
  %v48 = vld [vmem:[%s0 + $0x8] sm:$0xff]
  %v49 = vld [vmem:[%s4] sm:$0xff]
  %v50 = vld [vmem:[%s4 + $0x8] sm:$0xff]
  %v51 = vld [vmem:[%s4 + $0x10] sm:$0xff]
  %v52 = vld [vmem:[%s4 + $0x18] sm:$0xff]
  %vm53 = vcmask 64512
  %v55 = vsel %vm53, %v47, 0
  %v58 = vsel %vm53, %v48, 0
  %v61 = vsel %vm53, %v49, 0
  %v64 = vsel %vm53, %v50, 0
  %v67 = vsel %vm53, %v51, 0
  %v70 = vsel %vm53, %v52, 0
  %72 = vmatprep.subr.mxu0 0.0
  %73 = vmatpush1.xpose.msra.mxu0 0.0
  %74 = vmatprep.subr.mxu0 0.0
  %75 = vmatpush1.xpose.msra.mxu0 0.0
  %76 = vmatprep.subr.mxu0 0.0
  %77 = vmatpush1.xpose.msra.mxu0 0.0
  %78 = vmatprep.subr.mxu0 0.0
  %79 = vmatpush1.xpose.msra.mxu0 0.0
  %80 = vmatprep.subr.mxu0 0.0
  %81 = vmatpush1.xpose.msra.mxu0 0.0
  %82 = vmatprep.subr.mxu0 0.0
  %83 = vmatpush1.xpose.msra.mxu0 0.0
  %84 = vmatprep.subr.mxu0 0.0
  %85 = vmatpush1.xpose.msra.mxu0 0.0
  %86 = vmatprep.subr.mxu0 0.0
  %87 = vmatpush1.xpose.msra.mxu0 0.0
  %88 = vmatprep.subr.mxu0 0.0
  %89 = vmatpush1.xpose.msra.mxu0 0.0
  %90 = vmatprep.subr.mxu0 0.0
  %91 = vmatpush1.xpose.msra.mxu0 0.0
  %92 = vmatprep.subr.mxu0 0.0
  %93 = vmatpush1.xpose.msra.mxu0 0.0
  %94 = vmatprep.subr.mxu0 0.0
  %95 = vmatpush1.xpose.msra.mxu0 0.0
  %96 = vmatprep.subr.mxu0 0.0
  %97 = vmatpush1.xpose.msra.mxu0 %v70
  %98 = vmatprep.subr.mxu0 0.0
  %99 = vmatpush1.xpose.msra.mxu0 %v67
  %100 = vmatprep.subr.mxu0 0.0
  %101 = vmatpush1.xpose.msra.mxu0 %v64
  %102 = vmatprep.subr.mxu0 0.0
  %103 = vmatpush1.xpose.msra.mxu0 %v61
  %104 = vmatprep.subr.mxu0 0.0
  %105 = vmatpush2.xpose.msra.mxu0 0.0
  %106 = vmatprep.subr.mxu0 0.0
  %107 = vmatpush2.xpose.msra.mxu0 0.0
  %108 = vmatprep.subr.mxu0 0.0
  %109 = vmatpush2.xpose.msra.mxu0 0.0
  %110 = vmatprep.subr.mxu0 0.0
  %111 = vmatpush2.xpose.msra.mxu0 0.0
  %112 = vmatprep.subr.mxu0 0.0
  %113 = vmatpush2.xpose.msra.mxu0 0.0
  %114 = vmatprep.subr.mxu0 0.0
  %115 = vmatpush2.xpose.msra.mxu0 0.0
  %116 = vmatprep.subr.mxu0 0.0
  %117 = vmatpush2.xpose.msra.mxu0 0.0
  %118 = vmatprep.subr.mxu0 0.0
  %119 = vmatpush2.xpose.msra.mxu0 0.0
  %120 = vmatprep.subr.mxu0 0.0
  %121 = vmatpush2.xpose.msra.mxu0 0.0
  %122 = vmatprep.subr.mxu0 0.0
  %123 = vmatpush2.xpose.msra.mxu0 0.0
  %124 = vmatprep.subr.mxu0 0.0
  %125 = vmatpush2.xpose.msra.mxu0 0.0
  %126 = vmatprep.subr.mxu0 0.0
  %127 = vmatpush2.xpose.msra.mxu0 0.0
  %128 = vmatprep.subr.mxu0 0.0
  %129 = vmatpush2.xpose.msra.mxu0 0.0
  %130 = vmatprep.subr.mxu0 0.0
  %131 = vmatpush2.xpose.msra.mxu0 0.0
  %132 = vmatprep.subr.mxu0 0.0
  %133 = vmatpush2.xpose.msra.mxu0 0.0
  %134 = vmatprep.subr.mxu0 0.0
  %135 = vmatpush2.xpose.msra.mxu0 0.0
  %136 = vmatprep.mubr.f32.mxu0 0.0
  %137 = vmatmul.mubr.f32.gmra.mxu0 %v55
  %v138 = vpop.f32.mrf.mxu0
  %v139 = vadd.f32 0.0, %v138
  %v140 = vpop.f32.mrf.mxu0
  %141 = vmatprep.mubr.f32.mxu0 0.0
  %142 = vmatmul.mubr.f32.gmra.mxu0 %v58
  %v143 = vpop.f32.mrf.mxu0
  %v144 = vadd.f32 0.0, %v143
  %v145 = vpop.f32.mrf.mxu0
  %146 = vdwg.mxu0
  %vm147 = vcmp.ge.f32.partialorder %v139, 0.0
  %vm148 = vcmp.ge.f32.partialorder %v144, 0.0
  %v149 = vmul.f32 %v139, 0.01
  %v150 = vmul.f32 %v144, 0.01
  %v151 = vsel %vm147, %v139, %v149
  %v152 = vsel %vm148, %v144, %v150
  %vm153 = vcmask 261120
  %154 = vst.msk [vmem:[#allocation2] sm:$0xff] %vm153, %v151
  %155 = vst.msk [vmem:[#allocation2 + $0x8] sm:$0xff] %vm153, %v152
  %v156 = vld [vmem:[%s3] sm:$0xff]
  %v157 = vld [vmem:[%s3 + $0x8] sm:$0xff]
  %v158 = vld [vmem:[%s3 + $0x10] sm:$0xff]
  %v159 = vld [vmem:[%s3 + $0x18] sm:$0xff]
  %v160 = vld [vmem:[%s1] sm:$0xff]
  %v161 = vld [vmem:[%s1 + $0x8] sm:$0xff]
  %v162 = vld [vmem:[%s2] sm:$0x1]
  %v164 = vlaneseq
  %v165 = vshrl.u32 %v164, 7
  %v166 = vsub.s32 0, %v165
  %v167 = vrot.slane %v162, %v166
  %v169 = vld [vmem:[%s13] sm:$0x3f]
  %v170 = vld [vmem:[#allocation2] sm:$0xff]
  %v171 = vld [vmem:[#allocation2 + $0x8] sm:$0xff]
  %v172 = vld [vmem:[%s7] sm:$0xff]
  %v173 = vld [vmem:[%s7 + $0x8] sm:$0xff]
  %v174 = vld [vmem:[%s7 + $0x10] sm:$0xff]
  %v175 = vld [vmem:[%s7 + $0x18] sm:$0xff]
  %v177 = vsel %vm153, %v170, 0
  %v180 = vsel %vm153, %v171, 0
  %v183 = vsel %vm153, %v172, 0
  %v186 = vsel %vm153, %v173, 0
  %v189 = vsel %vm153, %v174, 0
  %v192 = vsel %vm153, %v175, 0
  %194 = vmatprep.subr.mxu0 0.0
  %195 = vmatpush1.xpose.msra.mxu0 0.0
  %196 = vmatprep.subr.mxu0 0.0
  %197 = vmatpush1.xpose.msra.mxu0 0.0
  %198 = vmatprep.subr.mxu0 0.0
  %199 = vmatpush1.xpose.msra.mxu0 0.0
  %200 = vmatprep.subr.mxu0 0.0
  %201 = vmatpush1.xpose.msra.mxu0 0.0
  %202 = vmatprep.subr.mxu0 0.0
  %203 = vmatpush1.xpose.msra.mxu0 0.0
  %204 = vmatprep.subr.mxu0 0.0
  %205 = vmatpush1.xpose.msra.mxu0 0.0
  %206 = vmatprep.subr.mxu0 0.0
  %207 = vmatpush1.xpose.msra.mxu0 0.0
  %208 = vmatprep.subr.mxu0 0.0
  %209 = vmatpush1.xpose.msra.mxu0 0.0
  %210 = vmatprep.subr.mxu0 0.0
  %211 = vmatpush1.xpose.msra.mxu0 0.0
  %212 = vmatprep.subr.mxu0 0.0
  %213 = vmatpush1.xpose.msra.mxu0 0.0
  %214 = vmatprep.subr.mxu0 0.0
  %215 = vmatpush1.xpose.msra.mxu0 0.0
  %216 = vmatprep.subr.mxu0 0.0
  %217 = vmatpush1.xpose.msra.mxu0 0.0
  %218 = vmatprep.subr.mxu0 0.0
  %219 = vmatpush1.xpose.msra.mxu0 %v192
  %220 = vmatprep.subr.mxu0 0.0
  %221 = vmatpush1.xpose.msra.mxu0 %v189
  %222 = vmatprep.subr.mxu0 0.0
  %223 = vmatpush1.xpose.msra.mxu0 %v186
  %224 = vmatprep.subr.mxu0 0.0
  %225 = vmatpush1.xpose.msra.mxu0 %v183
  %226 = vmatprep.subr.mxu0 0.0
  %227 = vmatpush2.xpose.msra.mxu0 0.0
  %228 = vmatprep.subr.mxu0 0.0
  %229 = vmatpush2.xpose.msra.mxu0 0.0
  %230 = vmatprep.subr.mxu0 0.0
  %231 = vmatpush2.xpose.msra.mxu0 0.0
  %232 = vmatprep.subr.mxu0 0.0
  %233 = vmatpush2.xpose.msra.mxu0 0.0
  %234 = vmatprep.subr.mxu0 0.0
  %235 = vmatpush2.xpose.msra.mxu0 0.0
  %236 = vmatprep.subr.mxu0 0.0
  %237 = vmatpush2.xpose.msra.mxu0 0.0
  %238 = vmatprep.subr.mxu0 0.0
  %239 = vmatpush2.xpose.msra.mxu0 0.0
  %240 = vmatprep.subr.mxu0 0.0
  %241 = vmatpush2.xpose.msra.mxu0 0.0
  %242 = vmatprep.subr.mxu0 0.0
  %243 = vmatpush2.xpose.msra.mxu0 0.0
  %244 = vmatprep.subr.mxu0 0.0
  %245 = vmatpush2.xpose.msra.mxu0 0.0
  %246 = vmatprep.subr.mxu0 0.0
  %247 = vmatpush2.xpose.msra.mxu0 0.0
  %248 = vmatprep.subr.mxu0 0.0
  %249 = vmatpush2.xpose.msra.mxu0 0.0
  %250 = vmatprep.subr.mxu0 0.0
  %251 = vmatpush2.xpose.msra.mxu0 0.0
  %252 = vmatprep.subr.mxu0 0.0
  %253 = vmatpush2.xpose.msra.mxu0 0.0
  %254 = vmatprep.subr.mxu0 0.0
  %255 = vmatpush2.xpose.msra.mxu0 0.0
  %256 = vmatprep.subr.mxu0 0.0
  %257 = vmatpush2.xpose.msra.mxu0 0.0
  %258 = vmatprep.mubr.f32.mxu0 0.0
  %259 = vmatmul.mubr.f32.gmra.mxu0 %v177
  %v260 = vpop.f32.mrf.mxu0
  %v261 = vadd.f32 0.0, %v260
  %v262 = vpop.f32.mrf.mxu0
  %263 = vmatprep.mubr.f32.mxu0 0.0
  %264 = vmatmul.mubr.f32.gmra.mxu0 %v180
  %v265 = vpop.f32.mrf.mxu0
  %v266 = vadd.f32 0.0, %v265
  %v267 = vpop.f32.mrf.mxu0
  %268 = vdwg.mxu0
  %vm269 = vcmp.ge.f32.partialorder %v261, 0.0
  %vm270 = vcmp.ge.f32.partialorder %v266, 0.0
  %v271 = vmul.f32 %v261, 0.01
  %v272 = vmul.f32 %v266, 0.01
  %v273 = vsel %vm269, %v261, %v271
  %v274 = vsel %vm270, %v266, %v272
  %v275 = vld [vmem:[%s8] sm:$0xff]
  %v276 = vld [vmem:[%s8 + $0x8] sm:$0xff]
  %v277 = vld [vmem:[%s8 + $0x10] sm:$0xff]
  %v278 = vld [vmem:[%s8 + $0x18] sm:$0xff]
  %v279 = vlaneseq
  %v280 = vshrl.u32 %v279, 7
  %v281 = vsub.s32 0, %v280
  %v282 = vrot.slane %v169, %v281
  %v283 = vsel %vm153, %v167, 0
  %v286 = vsel %vm153, %v275, 0
  %v289 = vsel %vm153, %v276, 0
  %v292 = vsel %vm153, %v277, 0
  %v295 = vsel %vm153, %v278, 0
  %297 = vmatprep.subr.mxu0 0.0
  %298 = vmatpush1.xpose.msra.mxu0 0.0
  %299 = vmatprep.subr.mxu0 0.0
  %300 = vmatpush1.xpose.msra.mxu0 0.0
  %301 = vmatprep.subr.mxu0 0.0
  %302 = vmatpush1.xpose.msra.mxu0 0.0
  %303 = vmatprep.subr.mxu0 0.0
  %304 = vmatpush1.xpose.msra.mxu0 0.0
  %305 = vmatprep.subr.mxu0 0.0
  %306 = vmatpush1.xpose.msra.mxu0 0.0
  %307 = vmatprep.subr.mxu0 0.0
  %308 = vmatpush1.xpose.msra.mxu0 0.0
  %309 = vmatprep.subr.mxu0 0.0
  %310 = vmatpush1.xpose.msra.mxu0 0.0
  %311 = vmatprep.subr.mxu0 0.0
  %312 = vmatpush1.xpose.msra.mxu0 0.0
  %313 = vmatprep.subr.mxu0 0.0
  %314 = vmatpush1.xpose.msra.mxu0 0.0
  %315 = vmatprep.subr.mxu0 0.0
  %316 = vmatpush1.xpose.msra.mxu0 0.0
  %317 = vmatprep.subr.mxu0 0.0
  %318 = vmatpush1.xpose.msra.mxu0 0.0
  %319 = vmatprep.subr.mxu0 0.0
  %320 = vmatpush1.xpose.msra.mxu0 0.0
  %321 = vmatprep.subr.mxu0 0.0
  %322 = vmatpush1.xpose.msra.mxu0 %v295
  %323 = vmatprep.subr.mxu0 0.0
  %324 = vmatpush1.xpose.msra.mxu0 %v292
  %325 = vmatprep.subr.mxu0 0.0
  %326 = vmatpush1.xpose.msra.mxu0 %v289
  %327 = vmatprep.subr.mxu0 0.0
  %328 = vmatpush1.xpose.msra.mxu0 %v286
  %329 = vmatprep.subr.mxu0 0.0
  %330 = vmatpush2.xpose.msra.mxu0 0.0
  %331 = vmatprep.subr.mxu0 0.0
  %332 = vmatpush2.xpose.msra.mxu0 0.0
  %333 = vmatprep.subr.mxu0 0.0
  %334 = vmatpush2.xpose.msra.mxu0 0.0
  %335 = vmatprep.subr.mxu0 0.0
  %336 = vmatpush2.xpose.msra.mxu0 0.0
  %337 = vmatprep.subr.mxu0 0.0
  %338 = vmatpush2.xpose.msra.mxu0 0.0
  %339 = vmatprep.subr.mxu0 0.0
  %340 = vmatpush2.xpose.msra.mxu0 0.0
  %341 = vmatprep.subr.mxu0 0.0
  %342 = vmatpush2.xpose.msra.mxu0 0.0
  %343 = vmatprep.subr.mxu0 0.0
  %344 = vmatpush2.xpose.msra.mxu0 0.0
  %345 = vmatprep.subr.mxu0 0.0
  %346 = vmatpush2.xpose.msra.mxu0 0.0
  %347 = vmatprep.subr.mxu0 0.0
  %348 = vmatpush2.xpose.msra.mxu0 0.0
  %349 = vmatprep.subr.mxu0 0.0
  %350 = vmatpush2.xpose.msra.mxu0 0.0
  %351 = vmatprep.subr.mxu0 0.0
  %352 = vmatpush2.xpose.msra.mxu0 0.0
  %353 = vmatprep.subr.mxu0 0.0
  %354 = vmatpush2.xpose.msra.mxu0 0.0
  %355 = vmatprep.subr.mxu0 0.0
  %356 = vmatpush2.xpose.msra.mxu0 0.0
  %357 = vmatprep.subr.mxu0 0.0
  %358 = vmatpush2.xpose.msra.mxu0 0.0
  %359 = vmatprep.subr.mxu0 0.0
  %360 = vmatpush2.xpose.msra.mxu0 0.0
  %361 = vmatprep.mubr.f32.mxu0 0.0
  %362 = vmatmul.mubr.f32.gmra.mxu0 %v283
  %v363 = vpop.f32.mrf.mxu0
  %v364 = vadd.f32 %v282, %v363
  %v365 = vpop.f32.mrf.mxu0
  %366 = vdwg.mxu0
  %v367 = vld [vmem:[%s9] sm:$0xff]
  %v368 = vld [vmem:[%s9 + $0x8] sm:$0xff]
  %v369 = vld [vmem:[%s9 + $0x10] sm:$0xff]
  %v370 = vld [vmem:[%s9 + $0x18] sm:$0xff]
  %v371 = vld [vmem:[%s9 + $0x20] sm:$0xff]
  %v372 = vld [vmem:[%s9 + $0x28] sm:$0xff]
  %v373 = vld [vmem:[%s9 + $0x30] sm:$0xff]
  %v374 = vld [vmem:[%s9 + $0x38] sm:$0xff]
  %v376 = vsel %vm153, %v273, 0
  %v379 = vsel %vm153, %v274, 0
  %v382 = vsel %vm153, %v367, 0
  %v385 = vsel %vm153, %v368, 0
  %v388 = vsel %vm153, %v369, 0
  %v391 = vsel %vm153, %v370, 0
  %v394 = vsel %vm153, %v371, 0
  %v397 = vsel %vm153, %v372, 0
  %v400 = vsel %vm153, %v373, 0
  %v403 = vsel %vm153, %v374, 0
  %405 = vmatprep.subr.mxu0 0.0
  %406 = vmatpush1.xpose.msra.mxu0 0.0
  %407 = vmatprep.subr.mxu0 0.0
  %408 = vmatpush1.xpose.msra.mxu0 0.0
  %409 = vmatprep.subr.mxu0 0.0
  %410 = vmatpush1.xpose.msra.mxu0 0.0
  %411 = vmatprep.subr.mxu0 0.0
  %412 = vmatpush1.xpose.msra.mxu0 0.0
  %413 = vmatprep.subr.mxu0 0.0
  %414 = vmatpush1.xpose.msra.mxu0 0.0
  %415 = vmatprep.subr.mxu0 0.0
  %416 = vmatpush1.xpose.msra.mxu0 0.0
  %417 = vmatprep.subr.mxu0 0.0
  %418 = vmatpush1.xpose.msra.mxu0 0.0
  %419 = vmatprep.subr.mxu0 0.0
  %420 = vmatpush1.xpose.msra.mxu0 0.0
  %421 = vmatprep.subr.mxu0 0.0
  %422 = vmatpush1.xpose.msra.mxu0 %v403
  %423 = vmatprep.subr.mxu0 0.0
  %424 = vmatpush1.xpose.msra.mxu0 %v400
  %425 = vmatprep.subr.mxu0 0.0
  %426 = vmatpush1.xpose.msra.mxu0 %v397
  %427 = vmatprep.subr.mxu0 0.0
  %428 = vmatpush1.xpose.msra.mxu0 %v394
  %429 = vmatprep.subr.mxu0 0.0
  %430 = vmatpush1.xpose.msra.mxu0 %v391
  %431 = vmatprep.subr.mxu0 0.0
  %432 = vmatpush1.xpose.msra.mxu0 %v388
  %433 = vmatprep.subr.mxu0 0.0
  %434 = vmatpush1.xpose.msra.mxu0 %v385
  %435 = vmatprep.subr.mxu0 0.0
  %436 = vmatpush1.xpose.msra.mxu0 %v382
  %437 = vmatprep.subr.mxu0 0.0
  %438 = vmatpush2.xpose.msra.mxu0 0.0
  %439 = vmatprep.subr.mxu0 0.0
  %440 = vmatpush2.xpose.msra.mxu0 0.0
  %441 = vmatprep.subr.mxu0 0.0
  %442 = vmatpush2.xpose.msra.mxu0 0.0
  %443 = vmatprep.subr.mxu0 0.0
  %444 = vmatpush2.xpose.msra.mxu0 0.0
  %445 = vmatprep.subr.mxu0 0.0
  %446 = vmatpush2.xpose.msra.mxu0 0.0
  %447 = vmatprep.subr.mxu0 0.0
  %448 = vmatpush2.xpose.msra.mxu0 0.0
  %449 = vmatprep.subr.mxu0 0.0
  %450 = vmatpush2.xpose.msra.mxu0 0.0
  %451 = vmatprep.subr.mxu0 0.0
  %452 = vmatpush2.xpose.msra.mxu0 0.0
  %453 = vmatprep.subr.mxu0 0.0
  %454 = vmatpush2.xpose.msra.mxu0 0.0
  %455 = vmatprep.subr.mxu0 0.0
  %456 = vmatpush2.xpose.msra.mxu0 0.0
  %457 = vmatprep.subr.mxu0 0.0
  %458 = vmatpush2.xpose.msra.mxu0 0.0
  %459 = vmatprep.subr.mxu0 0.0
  %460 = vmatpush2.xpose.msra.mxu0 0.0
  %461 = vmatprep.subr.mxu0 0.0
  %462 = vmatpush2.xpose.msra.mxu0 0.0
  %463 = vmatprep.subr.mxu0 0.0
  %464 = vmatpush2.xpose.msra.mxu0 0.0
  %465 = vmatprep.subr.mxu0 0.0
  %466 = vmatpush2.xpose.msra.mxu0 0.0
  %467 = vmatprep.subr.mxu0 0.0
  %468 = vmatpush2.xpose.msra.mxu0 0.0
  %469 = vmatprep.mubr.f32.mxu0 0.0
  %470 = vmatmul.mubr.f32.gmra.mxu0 %v376
  %v471 = vpop.f32.mrf.mxu0
  %v472 = vadd.f32 0.0, %v471
  %v473 = vpop.f32.mrf.mxu0
  %474 = vmatprep.mubr.f32.mxu0 0.0
  %475 = vmatmul.mubr.f32.gmra.mxu0 %v379
  %v476 = vpop.f32.mrf.mxu0
  %v477 = vadd.f32 0.0, %v476
  %v478 = vpop.f32.mrf.mxu0
  %479 = vdwg.mxu0
  %v480 = vlaneseq
  %v481 = vshrl.u32 %v480, 7
  %v482 = vsub.s32 1, %v481
  %v483 = vrot.slane %v169, %v482
  %v484 = vadd.f32 %v472, %v483
  %v485 = vadd.f32 %v477, %v483
  %v486 = vlaneseq
  %v487 = vshrl.u32 %v486, 7
  %v488 = vsub.s32 2, %v487
  %v489 = vrot.slane %v169, %v488
  %491 = vrot.lane.b32.xlu0 %v489, 32
  %v492 = vpop.permute.xlu0 %491
  %v494 = vadd.f32 %v472, %v492
  %v495 = vadd.f32 %v477, %v492
  %v498 = vunpack.c.l.s4 1966171168
  %v499 = vunpack.c.0.s8 %v498
  %v500 = vlaneseq
  %v501 = vshrl.u32 %v500, 7
  %v502 = vsub.s32 %v499, %v501
  %v503 = vrot.slane %v364, %v502
  %v504 = vcombine.high %v503, %v503
  %v506 = vunpack.c.l.s4 1966171168
  %v507 = vunpack.c.0.s8 %v506
  %v508 = vlaneseq
  %v509 = vshrl.u32 %v508, 7
  %v510 = vsub.s32 %v507, %v509
  %v511 = vrot.slane %v503, %v510
  %v513 = vunpack.c.l.s4 1966171168
  %v514 = vunpack.c.0.s8 %v513
  %v515 = vlaneseq
  %v516 = vshrl.u32 %v515, 7
  %v517 = vsub.s32 %v514, %v516
  %v518 = vrot.slane %v504, %v517
  %v519 = vlaneseq
  %v520 = vshrl.u32 %v519, 7
  %v521 = vsub.s32 0, %v520
  %v522 = vrot.slane %v511, %v521
  %v523 = vlaneseq
  %v524 = vshrl.u32 %v523, 7
  %v525 = vsub.s32 0, %v524
  %v526 = vrot.slane %v518, %v525
  %v529 = vmul.f32 %v484, %v522
  %v530 = vmul.f32 %v485, %v526
  %v532 = vsel %vm153, %v529, 0
  %v535 = vsel %vm153, %v530, 0
  %537 = vmatprep.subr.mxu0 0.0
  %538 = vmatpush1.msra.mxu0 0.0
  %539 = vmatprep.subr.mxu0 0.0
  %540 = vmatpush1.msra.mxu0 0.0
  %541 = vmatprep.subr.mxu0 0.0
  %542 = vmatpush1.msra.mxu0 0.0
  %543 = vmatprep.subr.mxu0 0.0
  %544 = vmatpush1.msra.mxu0 0.0
  %545 = vmatprep.subr.mxu0 0.0
  %546 = vmatpush1.msra.mxu0 0.0
  %547 = vmatprep.subr.mxu0 0.0
  %548 = vmatpush1.msra.mxu0 0.0
  %549 = vmatprep.subr.mxu0 0.0
  %550 = vmatpush1.msra.mxu0 0.0
  %551 = vmatprep.subr.mxu0 0.0
  %552 = vmatpush1.msra.mxu0 0.0
  %553 = vmatprep.subr.mxu0 0.0
  %554 = vmatpush1.msra.mxu0 0.0
  %555 = vmatprep.subr.mxu0 0.0
  %556 = vmatpush1.msra.mxu0 0.0
  %557 = vmatprep.subr.mxu0 0.0
  %558 = vmatpush1.msra.mxu0 0.0
  %559 = vmatprep.subr.mxu0 0.0
  %560 = vmatpush1.msra.mxu0 0.0
  %561 = vmatprep.subr.mxu0 0.0
  %562 = vmatpush1.msra.mxu0 %v159
  %563 = vmatprep.subr.mxu0 0.0
  %564 = vmatpush1.msra.mxu0 %v158
  %565 = vmatprep.subr.mxu0 0.0
  %566 = vmatpush1.msra.mxu0 %v157
  %567 = vmatprep.subr.mxu0 0.0
  %568 = vmatpush1.msra.mxu0 %v156
  %569 = vmatprep.subr.mxu0 0.0
  %570 = vmatpush2.msra.mxu0 0.0
  %571 = vmatprep.subr.mxu0 0.0
  %572 = vmatpush2.msra.mxu0 0.0
  %573 = vmatprep.subr.mxu0 0.0
  %574 = vmatpush2.msra.mxu0 0.0
  %575 = vmatprep.subr.mxu0 0.0
  %576 = vmatpush2.msra.mxu0 0.0
  %577 = vmatprep.subr.mxu0 0.0
  %578 = vmatpush2.msra.mxu0 0.0
  %579 = vmatprep.subr.mxu0 0.0
  %580 = vmatpush2.msra.mxu0 0.0
  %581 = vmatprep.subr.mxu0 0.0
  %582 = vmatpush2.msra.mxu0 0.0
  %583 = vmatprep.subr.mxu0 0.0
  %584 = vmatpush2.msra.mxu0 0.0
  %585 = vmatprep.subr.mxu0 0.0
  %586 = vmatpush2.msra.mxu0 0.0
  %587 = vmatprep.subr.mxu0 0.0
  %588 = vmatpush2.msra.mxu0 0.0
  %589 = vmatprep.subr.mxu0 0.0
  %590 = vmatpush2.msra.mxu0 0.0
  %591 = vmatprep.subr.mxu0 0.0
  %592 = vmatpush2.msra.mxu0 0.0
  %593 = vmatprep.subr.mxu0 0.0
  %594 = vmatpush2.msra.mxu0 0.0
  %595 = vmatprep.subr.mxu0 0.0
  %596 = vmatpush2.msra.mxu0 0.0
  %597 = vmatprep.subr.mxu0 0.0
  %598 = vmatpush2.msra.mxu0 0.0
  %599 = vmatprep.subr.mxu0 0.0
  %600 = vmatpush2.msra.mxu0 0.0
  %601 = vmatprep.mubr.f32.mxu0 0.0
  %602 = vmatmul.mubr.f32.gmra.mxu0 %v532
  %v603 = vpop.f32.mrf.mxu0
  %v604 = vadd.f32 0.0, %v603
  %v605 = vpop.f32.mrf.mxu0
  %606 = vmatprep.mubr.f32.mxu0 0.0
  %607 = vmatmul.mubr.f32.gmra.mxu0 %v535
  %v608 = vpop.f32.mrf.mxu0
  %v609 = vadd.f32 0.0, %v608
  %v610 = vpop.f32.mrf.mxu0
  %611 = vdwg.mxu0
  %v612 = vmul.f32 %v604, 0.35355338
  %v613 = vmul.f32 %v609, 0.35355338
  %615 = vset.pattern.permute.xlu0 0
  %616 = vperm.xlu0 %615, %v160
  %v617 = vpop.permute.xlu0 %616
  %620 = vset.pattern.permute.xlu0 0
  %621 = vperm.xlu0 %620, %v161
  %v622 = vpop.permute.xlu0 %621
  %v624 = vadd.f32 %v612, %v617
  %v625 = vadd.f32 %v613, %v622
  %vm626 = vcmask 31744
  %v627 = vsel %vm626, %v624, -inf
  %v628 = vrot.slane %v627, 4
  %v629 = vmax.f32 %v627, %v628
  %v630 = vrot.slane %v629, 2
  %v631 = vmax.f32 %v629, %v630
  %v632 = vrot.slane %v631, 1
  %v633 = vmax.f32 %v631, %v632
  %v634 = vsel %vm626, %v625, -inf
  %v635 = vrot.slane %v634, 4
  %v636 = vmax.f32 %v634, %v635
  %v637 = vrot.slane %v636, 2
  %v638 = vmax.f32 %v636, %v637
  %v639 = vrot.slane %v638, 1
  %v640 = vmax.f32 %v638, %v639
  %v641 = vsub.f32 %v624, %v633
  %v642 = vsub.f32 %v625, %v640
  %v643 = vmul.f32 %v641, 1.442695
  %v644 = vpow.pop %v643
  %v645 = vmul.f32 %v642, 1.442695
  %v646 = vpow.pop %v645
  %v647 = vsel %vm626, %v644, 0.0
  %v648 = vrot.slane %v647, 4
  %v649 = vadd.f32 %v647, %v648
  %v650 = vrot.slane %v649, 2
  %v651 = vadd.f32 %v649, %v650
  %v652 = vrot.slane %v651, 1
  %v653 = vadd.f32 %v651, %v652
  %v654 = vsel %vm626, %v646, 0.0
  %v655 = vrot.slane %v654, 4
  %v656 = vadd.f32 %v654, %v655
  %v657 = vrot.slane %v656, 2
  %v658 = vadd.f32 %v656, %v657
  %v659 = vrot.slane %v658, 1
  %v660 = vadd.f32 %v658, %v659
  %v661 = vrcp.pop %v653
  %v662 = vmul.f32 %v644, %v661
  %v663 = vrcp.pop %v660
  %v664 = vmul.f32 %v646, %v663
  %v666 = vsel %vm626, %v662, 0
  %v669 = vsel %vm626, %v664, 0
  %v672 = vsel %vm626, %v156, 0
  %v675 = vsel %vm626, %v157, 0
  %v678 = vsel %vm626, %v158, 0
  %v681 = vsel %vm626, %v159, 0
  %683 = vmatprep.subr.mxu0 0.0
  %684 = vmatpush1.xpose.msra.mxu0 0.0
  %685 = vmatprep.subr.mxu0 0.0
  %686 = vmatpush1.xpose.msra.mxu0 0.0
  %687 = vmatprep.subr.mxu0 0.0
  %688 = vmatpush1.xpose.msra.mxu0 0.0
  %689 = vmatprep.subr.mxu0 0.0
  %690 = vmatpush1.xpose.msra.mxu0 0.0
  %691 = vmatprep.subr.mxu0 0.0
  %692 = vmatpush1.xpose.msra.mxu0 0.0
  %693 = vmatprep.subr.mxu0 0.0
  %694 = vmatpush1.xpose.msra.mxu0 0.0
  %695 = vmatprep.subr.mxu0 0.0
  %696 = vmatpush1.xpose.msra.mxu0 0.0
  %697 = vmatprep.subr.mxu0 0.0
  %698 = vmatpush1.xpose.msra.mxu0 0.0
  %699 = vmatprep.subr.mxu0 0.0
  %700 = vmatpush1.xpose.msra.mxu0 0.0
  %701 = vmatprep.subr.mxu0 0.0
  %702 = vmatpush1.xpose.msra.mxu0 0.0
  %703 = vmatprep.subr.mxu0 0.0
  %704 = vmatpush1.xpose.msra.mxu0 0.0
  %705 = vmatprep.subr.mxu0 0.0
  %706 = vmatpush1.xpose.msra.mxu0 0.0
  %707 = vmatprep.subr.mxu0 0.0
  %708 = vmatpush1.xpose.msra.mxu0 %v681
  %709 = vmatprep.subr.mxu0 0.0
  %710 = vmatpush1.xpose.msra.mxu0 %v678
  %711 = vmatprep.subr.mxu0 0.0
  %712 = vmatpush1.xpose.msra.mxu0 %v675
  %713 = vmatprep.subr.mxu0 0.0
  %714 = vmatpush1.xpose.msra.mxu0 %v672
  %715 = vmatprep.subr.mxu0 0.0
  %716 = vmatpush2.xpose.msra.mxu0 0.0
  %717 = vmatprep.subr.mxu0 0.0
  %718 = vmatpush2.xpose.msra.mxu0 0.0
  %719 = vmatprep.subr.mxu0 0.0
  %720 = vmatpush2.xpose.msra.mxu0 0.0
  %721 = vmatprep.subr.mxu0 0.0
  %722 = vmatpush2.xpose.msra.mxu0 0.0
  %723 = vmatprep.subr.mxu0 0.0
  %724 = vmatpush2.xpose.msra.mxu0 0.0
  %725 = vmatprep.subr.mxu0 0.0
  %726 = vmatpush2.xpose.msra.mxu0 0.0
  %727 = vmatprep.subr.mxu0 0.0
  %728 = vmatpush2.xpose.msra.mxu0 0.0
  %729 = vmatprep.subr.mxu0 0.0
  %730 = vmatpush2.xpose.msra.mxu0 0.0
  %731 = vmatprep.subr.mxu0 0.0
  %732 = vmatpush2.xpose.msra.mxu0 0.0
  %733 = vmatprep.subr.mxu0 0.0
  %734 = vmatpush2.xpose.msra.mxu0 0.0
  %735 = vmatprep.subr.mxu0 0.0
  %736 = vmatpush2.xpose.msra.mxu0 0.0
  %737 = vmatprep.subr.mxu0 0.0
  %738 = vmatpush2.xpose.msra.mxu0 0.0
  %739 = vmatprep.subr.mxu0 0.0
  %740 = vmatpush2.xpose.msra.mxu0 0.0
  %741 = vmatprep.subr.mxu0 0.0
  %742 = vmatpush2.xpose.msra.mxu0 0.0
  %743 = vmatprep.subr.mxu0 0.0
  %744 = vmatpush2.xpose.msra.mxu0 0.0
  %745 = vmatprep.subr.mxu0 0.0
  %746 = vmatpush2.xpose.msra.mxu0 0.0
  %747 = vmatprep.mubr.f32.mxu0 0.0
  %748 = vmatmul.mubr.f32.gmra.mxu0 %v666
  %v749 = vpop.f32.mrf.mxu0
  %v750 = vadd.f32 0.0, %v749
  %v751 = vpop.f32.mrf.mxu0
  %752 = vmatprep.mubr.f32.mxu0 0.0
  %753 = vmatmul.mubr.f32.gmra.mxu0 %v669
  %v754 = vpop.f32.mrf.mxu0
  %v755 = vadd.f32 0.0, %v754
  %v756 = vpop.f32.mrf.mxu0
  %757 = vdwg.mxu0
  %760 = vrot.lane.b32.xlu0 %v494, 96
  %v761 = vpop.permute.xlu0 %760
  %762 = vrot.lane.b32.xlu0 %v495, 96
  %v763 = vpop.permute.xlu0 %762
  %v766 = vmul.f32 %v750, %v761
  %v767 = vmul.f32 %v755, %v763
  %v768 = vsel %vm153, %v766, 0.0
  %v769 = vrot.slane %v768, 4
  %v770 = vadd.f32 %v768, %v769
  %v771 = vrot.slane %v770, 2
  %v772 = vadd.f32 %v770, %v771
  %v773 = vrot.slane %v772, 1
  %v774 = vadd.f32 %v772, %v773
  %v775 = vsel %vm153, %v767, 0.0
  %v776 = vrot.slane %v775, 4
  %v777 = vadd.f32 %v775, %v776
  %v778 = vrot.slane %v777, 2
  %v779 = vadd.f32 %v777, %v778
  %v780 = vrot.slane %v779, 1
  %v781 = vadd.f32 %v779, %v780
  %v782 = vld [vmem:[%s10] sm:$0xff]
  %v783 = vld [vmem:[%s10 + $0x8] sm:$0xff]
  %v784 = vld [vmem:[%s10 + $0x10] sm:$0xff]
  %v785 = vld [vmem:[%s10 + $0x18] sm:$0xff]
  %v786 = vlaneseq
  %v787 = vshrl.u32 %v786, 7
  %v788 = vsub.s32 3, %v787
  %v789 = vrot.slane %v169, %v788
  %vm792 = vcmask 1041409
  %v793 = vsel %vm792, %v781, %v774
  %v794 = vsel %vm153, %v793, 0
  %v797 = vsel %vm153, %v782, 0
  %v800 = vsel %vm153, %v783, 0
  %v803 = vsel %vm153, %v784, 0
  %v806 = vsel %vm153, %v785, 0
  %808 = vmatprep.subr.mxu0 0.0
  %809 = vmatpush1.xpose.msra.mxu0 0.0
  %810 = vmatprep.subr.mxu0 0.0
  %811 = vmatpush1.xpose.msra.mxu0 0.0
  %812 = vmatprep.subr.mxu0 0.0
  %813 = vmatpush1.xpose.msra.mxu0 0.0
  %814 = vmatprep.subr.mxu0 0.0
  %815 = vmatpush1.xpose.msra.mxu0 0.0
  %816 = vmatprep.subr.mxu0 0.0
  %817 = vmatpush1.xpose.msra.mxu0 0.0
  %818 = vmatprep.subr.mxu0 0.0
  %819 = vmatpush1.xpose.msra.mxu0 0.0
  %820 = vmatprep.subr.mxu0 0.0
  %821 = vmatpush1.xpose.msra.mxu0 0.0
  %822 = vmatprep.subr.mxu0 0.0
  %823 = vmatpush1.xpose.msra.mxu0 0.0
  %824 = vmatprep.subr.mxu0 0.0
  %825 = vmatpush1.xpose.msra.mxu0 0.0
  %826 = vmatprep.subr.mxu0 0.0
  %827 = vmatpush1.xpose.msra.mxu0 0.0
  %828 = vmatprep.subr.mxu0 0.0
  %829 = vmatpush1.xpose.msra.mxu0 0.0
  %830 = vmatprep.subr.mxu0 0.0
  %831 = vmatpush1.xpose.msra.mxu0 0.0
  %832 = vmatprep.subr.mxu0 0.0
  %833 = vmatpush1.xpose.msra.mxu0 %v806
  %834 = vmatprep.subr.mxu0 0.0
  %835 = vmatpush1.xpose.msra.mxu0 %v803
  %836 = vmatprep.subr.mxu0 0.0
  %837 = vmatpush1.xpose.msra.mxu0 %v800
  %838 = vmatprep.subr.mxu0 0.0
  %839 = vmatpush1.xpose.msra.mxu0 %v797
  %840 = vmatprep.subr.mxu0 0.0
  %841 = vmatpush2.xpose.msra.mxu0 0.0
  %842 = vmatprep.subr.mxu0 0.0
  %843 = vmatpush2.xpose.msra.mxu0 0.0
  %844 = vmatprep.subr.mxu0 0.0
  %845 = vmatpush2.xpose.msra.mxu0 0.0
  %846 = vmatprep.subr.mxu0 0.0
  %847 = vmatpush2.xpose.msra.mxu0 0.0
  %848 = vmatprep.subr.mxu0 0.0
  %849 = vmatpush2.xpose.msra.mxu0 0.0
  %850 = vmatprep.subr.mxu0 0.0
  %851 = vmatpush2.xpose.msra.mxu0 0.0
  %852 = vmatprep.subr.mxu0 0.0
  %853 = vmatpush2.xpose.msra.mxu0 0.0
  %854 = vmatprep.subr.mxu0 0.0
  %855 = vmatpush2.xpose.msra.mxu0 0.0
  %856 = vmatprep.subr.mxu0 0.0
  %857 = vmatpush2.xpose.msra.mxu0 0.0
  %858 = vmatprep.subr.mxu0 0.0
  %859 = vmatpush2.xpose.msra.mxu0 0.0
  %860 = vmatprep.subr.mxu0 0.0
  %861 = vmatpush2.xpose.msra.mxu0 0.0
  %862 = vmatprep.subr.mxu0 0.0
  %863 = vmatpush2.xpose.msra.mxu0 0.0
  %864 = vmatprep.subr.mxu0 0.0
  %865 = vmatpush2.xpose.msra.mxu0 0.0
  %866 = vmatprep.subr.mxu0 0.0
  %867 = vmatpush2.xpose.msra.mxu0 0.0
  %868 = vmatprep.subr.mxu0 0.0
  %869 = vmatpush2.xpose.msra.mxu0 0.0
  %870 = vmatprep.subr.mxu0 0.0
  %871 = vmatpush2.xpose.msra.mxu0 0.0
  %872 = vmatprep.mubr.f32.mxu0 0.0
  %873 = vmatmul.mubr.f32.gmra.mxu0 %v794
  %v874 = vpop.f32.mrf.mxu0
  %v875 = vadd.f32 %v789, %v874
  %v876 = vpop.f32.mrf.mxu0
  %877 = vdwg.mxu0
  %v878 = vld [vmem:[%s11] sm:$0xff]
  %v879 = vld [vmem:[%s11 + $0x8] sm:$0xff]
  %v880 = vld [vmem:[%s11 + $0x10] sm:$0xff]
  %v881 = vld [vmem:[%s11 + $0x18] sm:$0xff]
  %v883 = vsel %vm153, %v875, 0
  %v886 = vsel %vm153, %v878, 0
  %v889 = vsel %vm153, %v879, 0
  %v892 = vsel %vm153, %v880, 0
  %v895 = vsel %vm153, %v881, 0
  %897 = vmatprep.subr.mxu0 0.0
  %898 = vmatpush1.xpose.msra.mxu0 0.0
  %899 = vmatprep.subr.mxu0 0.0
  %900 = vmatpush1.xpose.msra.mxu0 0.0
  %901 = vmatprep.subr.mxu0 0.0
  %902 = vmatpush1.xpose.msra.mxu0 0.0
  %903 = vmatprep.subr.mxu0 0.0
  %904 = vmatpush1.xpose.msra.mxu0 0.0
  %905 = vmatprep.subr.mxu0 0.0
  %906 = vmatpush1.xpose.msra.mxu0 0.0
  %907 = vmatprep.subr.mxu0 0.0
  %908 = vmatpush1.xpose.msra.mxu0 0.0
  %909 = vmatprep.subr.mxu0 0.0
  %910 = vmatpush1.xpose.msra.mxu0 0.0
  %911 = vmatprep.subr.mxu0 0.0
  %912 = vmatpush1.xpose.msra.mxu0 0.0
  %913 = vmatprep.subr.mxu0 0.0
  %914 = vmatpush1.xpose.msra.mxu0 0.0
  %915 = vmatprep.subr.mxu0 0.0
  %916 = vmatpush1.xpose.msra.mxu0 0.0
  %917 = vmatprep.subr.mxu0 0.0
  %918 = vmatpush1.xpose.msra.mxu0 0.0
  %919 = vmatprep.subr.mxu0 0.0
  %920 = vmatpush1.xpose.msra.mxu0 0.0
  %921 = vmatprep.subr.mxu0 0.0
  %922 = vmatpush1.xpose.msra.mxu0 %v895
  %923 = vmatprep.subr.mxu0 0.0
  %924 = vmatpush1.xpose.msra.mxu0 %v892
  %925 = vmatprep.subr.mxu0 0.0
  %926 = vmatpush1.xpose.msra.mxu0 %v889
  %927 = vmatprep.subr.mxu0 0.0
  %928 = vmatpush1.xpose.msra.mxu0 %v886
  %929 = vmatprep.subr.mxu0 0.0
  %930 = vmatpush2.xpose.msra.mxu0 0.0
  %931 = vmatprep.subr.mxu0 0.0
  %932 = vmatpush2.xpose.msra.mxu0 0.0
  %933 = vmatprep.subr.mxu0 0.0
  %934 = vmatpush2.xpose.msra.mxu0 0.0
  %935 = vmatprep.subr.mxu0 0.0
  %936 = vmatpush2.xpose.msra.mxu0 0.0
  %937 = vmatprep.subr.mxu0 0.0
  %938 = vmatpush2.xpose.msra.mxu0 0.0
  %939 = vmatprep.subr.mxu0 0.0
  %940 = vmatpush2.xpose.msra.mxu0 0.0
  %941 = vmatprep.subr.mxu0 0.0
  %942 = vmatpush2.xpose.msra.mxu0 0.0
  %943 = vmatprep.subr.mxu0 0.0
  %944 = vmatpush2.xpose.msra.mxu0 0.0
  %945 = vmatprep.subr.mxu0 0.0
  %946 = vmatpush2.xpose.msra.mxu0 0.0
  %947 = vmatprep.subr.mxu0 0.0
  %948 = vmatpush2.xpose.msra.mxu0 0.0
  %949 = vmatprep.subr.mxu0 0.0
  %950 = vmatpush2.xpose.msra.mxu0 0.0
  %951 = vmatprep.subr.mxu0 0.0
  %952 = vmatpush2.xpose.msra.mxu0 0.0
  %953 = vmatprep.subr.mxu0 0.0
  %954 = vmatpush2.xpose.msra.mxu0 0.0
  %955 = vmatprep.subr.mxu0 0.0
  %956 = vmatpush2.xpose.msra.mxu0 0.0
  %957 = vmatprep.subr.mxu0 0.0
  %958 = vmatpush2.xpose.msra.mxu0 0.0
  %959 = vmatprep.subr.mxu0 0.0
  %960 = vmatpush2.xpose.msra.mxu0 0.0
  %961 = vmatprep.mubr.f32.mxu0 0.0
  %962 = vmatmul.mubr.f32.gmra.mxu0 %v883
  %v963 = vpop.f32.mrf.mxu0
  %v964 = vadd.f32 0.0, %v963
  %v965 = vpop.f32.mrf.mxu0
  %966 = vdwg.mxu0
  %vm967 = vcmp.ge.f32.partialorder %v964, 0.0
  %v968 = vmul.f32 %v964, 0.01
  %v969 = vsel %vm967, %v964, %v968
  %v970 = vadd.f32 %v969, %v167
  %vm971 = vcmask 254976
  %v972 = vsel %vm971, %v970, 0.0
  %973 = vadd.xlane.f32.xlu0 %v972
  %v974 = vpop.xlane.xlu0 %973
  %v975 = vrcp.pop 32.0
  %v976 = vmul.f32 %v974, %v975
  %v977 = vsub.f32 %v970, %v976
  %v978 = vmul.f32 %v977, %v977
  %v979 = vsel %vm971, %v978, 0.0
  %980 = vadd.xlane.f32.xlu0 %v979
  %v981 = vpop.xlane.xlu0 %980
  %v982 = vmul.f32 %v981, %v975
  %v983 = vadd.f32 %v982, 1e-05
  %v984 = vrsqrt.pop %v983
  %v985 = vmul.f32 %v977, %v984
  %v986 = vlaneseq
  %v987 = vshrl.u32 %v986, 7
  %v988 = vsub.s32 4, %v987
  %v989 = vrot.slane %v169, %v988
  %v990 = vmul.f32 %v985, %v989
  %v991 = vlaneseq
  %v992 = vshrl.u32 %v991, 7
  %v993 = vsub.s32 5, %v992
  %v994 = vrot.slane %v169, %v993
  %v995 = vadd.f32 %v990, %v994
  %v996 = vld [vmem:[%s12] sm:$0xff]
  %v997 = vld [vmem:[%s12 + $0x8] sm:$0xff]
  %v998 = vld [vmem:[%s12 + $0x10] sm:$0xff]
  %v999 = vld [vmem:[%s12 + $0x18] sm:$0xff]
  %v1001 = vsel %vm153, %v995, 0
  %v1004 = vsel %vm153, %v996, 0
  %v1007 = vsel %vm153, %v997, 0
  %v1010 = vsel %vm153, %v998, 0
  %v1013 = vsel %vm153, %v999, 0
  %1015 = vmatprep.subr.mxu0 0.0
  %1016 = vmatpush1.xpose.msra.mxu0 0.0
  %1017 = vmatprep.subr.mxu0 0.0
  %1018 = vmatpush1.xpose.msra.mxu0 0.0
  %1019 = vmatprep.subr.mxu0 0.0
  %1020 = vmatpush1.xpose.msra.mxu0 0.0
  %1021 = vmatprep.subr.mxu0 0.0
  %1022 = vmatpush1.xpose.msra.mxu0 0.0
  %1023 = vmatprep.subr.mxu0 0.0
  %1024 = vmatpush1.xpose.msra.mxu0 0.0
  %1025 = vmatprep.subr.mxu0 0.0
  %1026 = vmatpush1.xpose.msra.mxu0 0.0
  %1027 = vmatprep.subr.mxu0 0.0
  %1028 = vmatpush1.xpose.msra.mxu0 0.0
  %1029 = vmatprep.subr.mxu0 0.0
  %1030 = vmatpush1.xpose.msra.mxu0 0.0
  %1031 = vmatprep.subr.mxu0 0.0
  %1032 = vmatpush1.xpose.msra.mxu0 0.0
  %1033 = vmatprep.subr.mxu0 0.0
  %1034 = vmatpush1.xpose.msra.mxu0 0.0
  %1035 = vmatprep.subr.mxu0 0.0
  %1036 = vmatpush1.xpose.msra.mxu0 0.0
  %1037 = vmatprep.subr.mxu0 0.0
  %1038 = vmatpush1.xpose.msra.mxu0 0.0
  %1039 = vmatprep.subr.mxu0 0.0
  %1040 = vmatpush1.xpose.msra.mxu0 %v1013
  %1041 = vmatprep.subr.mxu0 0.0
  %1042 = vmatpush1.xpose.msra.mxu0 %v1010
  %1043 = vmatprep.subr.mxu0 0.0
  %1044 = vmatpush1.xpose.msra.mxu0 %v1007
  %1045 = vmatprep.subr.mxu0 0.0
  %1046 = vmatpush1.xpose.msra.mxu0 %v1004
  %1047 = vmatprep.subr.mxu0 0.0
  %1048 = vmatpush2.xpose.msra.mxu0 0.0
  %1049 = vmatprep.subr.mxu0 0.0
  %1050 = vmatpush2.xpose.msra.mxu0 0.0
  %1051 = vmatprep.subr.mxu0 0.0
  %1052 = vmatpush2.xpose.msra.mxu0 0.0
  %1053 = vmatprep.subr.mxu0 0.0
  %1054 = vmatpush2.xpose.msra.mxu0 0.0
  %1055 = vmatprep.subr.mxu0 0.0
  %1056 = vmatpush2.xpose.msra.mxu0 0.0
  %1057 = vmatprep.subr.mxu0 0.0
  %1058 = vmatpush2.xpose.msra.mxu0 0.0
  %1059 = vmatprep.subr.mxu0 0.0
  %1060 = vmatpush2.xpose.msra.mxu0 0.0
  %1061 = vmatprep.subr.mxu0 0.0
  %1062 = vmatpush2.xpose.msra.mxu0 0.0
  %1063 = vmatprep.subr.mxu0 0.0
  %1064 = vmatpush2.xpose.msra.mxu0 0.0
  %1065 = vmatprep.subr.mxu0 0.0
  %1066 = vmatpush2.xpose.msra.mxu0 0.0
  %1067 = vmatprep.subr.mxu0 0.0
  %1068 = vmatpush2.xpose.msra.mxu0 0.0
  %1069 = vmatprep.subr.mxu0 0.0
  %1070 = vmatpush2.xpose.msra.mxu0 0.0
  %1071 = vmatprep.subr.mxu0 0.0
  %1072 = vmatpush2.xpose.msra.mxu0 0.0
  %1073 = vmatprep.subr.mxu0 0.0
  %1074 = vmatpush2.xpose.msra.mxu0 0.0
  %1075 = vmatprep.subr.mxu0 0.0
  %1076 = vmatpush2.xpose.msra.mxu0 0.0
  %1077 = vmatprep.subr.mxu0 0.0
  %1078 = vmatpush2.xpose.msra.mxu0 0.0
  %1079 = vmatprep.mubr.f32.mxu0 0.0
  %1080 = vmatmul.mubr.f32.gmra.mxu0 %v1001
  %v1081 = vpop.f32.mrf.mxu0
  %v1082 = vadd.f32 0.0, %v1081
  %v1083 = vpop.f32.mrf.mxu0
  %1084 = vdwg.mxu0
  %vm1085 = vcmp.ge.f32.partialorder %v1082, 0.0
  %v1086 = vmul.f32 %v1082, 0.01
  %v1087 = vsel %vm1085, %v1082, %v1086
  %s1088 = scalar_lea.vmem %s13, 8
  %v1089 = vld [vmem:[%s1088] sm:$0x3f]
  %s1090 = scalar_lea.vmem %s7, 32
  %v1091 = vld [vmem:[%s1090] sm:$0xff]
  %v1092 = vld [vmem:[%s1090 + $0x8] sm:$0xff]
  %v1093 = vld [vmem:[%s1090 + $0x10] sm:$0xff]
  %v1094 = vld [vmem:[%s1090 + $0x18] sm:$0xff]
  %v1096 = vsel %vm153, %v1091, 0
  %v1099 = vsel %vm153, %v1092, 0
  %v1102 = vsel %vm153, %v1093, 0
  %v1105 = vsel %vm153, %v1094, 0
  %1107 = vmatprep.subr.mxu0 0.0
  %1108 = vmatpush1.xpose.msra.mxu0 0.0
  %1109 = vmatprep.subr.mxu0 0.0
  %1110 = vmatpush1.xpose.msra.mxu0 0.0
  %1111 = vmatprep.subr.mxu0 0.0
  %1112 = vmatpush1.xpose.msra.mxu0 0.0
  %1113 = vmatprep.subr.mxu0 0.0
  %1114 = vmatpush1.xpose.msra.mxu0 0.0
  %1115 = vmatprep.subr.mxu0 0.0
  %1116 = vmatpush1.xpose.msra.mxu0 0.0
  %1117 = vmatprep.subr.mxu0 0.0
  %1118 = vmatpush1.xpose.msra.mxu0 0.0
  %1119 = vmatprep.subr.mxu0 0.0
  %1120 = vmatpush1.xpose.msra.mxu0 0.0
  %1121 = vmatprep.subr.mxu0 0.0
  %1122 = vmatpush1.xpose.msra.mxu0 0.0
  %1123 = vmatprep.subr.mxu0 0.0
  %1124 = vmatpush1.xpose.msra.mxu0 0.0
  %1125 = vmatprep.subr.mxu0 0.0
  %1126 = vmatpush1.xpose.msra.mxu0 0.0
  %1127 = vmatprep.subr.mxu0 0.0
  %1128 = vmatpush1.xpose.msra.mxu0 0.0
  %1129 = vmatprep.subr.mxu0 0.0
  %1130 = vmatpush1.xpose.msra.mxu0 0.0
  %1131 = vmatprep.subr.mxu0 0.0
  %1132 = vmatpush1.xpose.msra.mxu0 %v1105
  %1133 = vmatprep.subr.mxu0 0.0
  %1134 = vmatpush1.xpose.msra.mxu0 %v1102
  %1135 = vmatprep.subr.mxu0 0.0
  %1136 = vmatpush1.xpose.msra.mxu0 %v1099
  %1137 = vmatprep.subr.mxu0 0.0
  %1138 = vmatpush1.xpose.msra.mxu0 %v1096
  %1139 = vmatprep.subr.mxu0 0.0
  %1140 = vmatpush2.xpose.msra.mxu0 0.0
  %1141 = vmatprep.subr.mxu0 0.0
  %1142 = vmatpush2.xpose.msra.mxu0 0.0
  %1143 = vmatprep.subr.mxu0 0.0
  %1144 = vmatpush2.xpose.msra.mxu0 0.0
  %1145 = vmatprep.subr.mxu0 0.0
  %1146 = vmatpush2.xpose.msra.mxu0 0.0
  %1147 = vmatprep.subr.mxu0 0.0
  %1148 = vmatpush2.xpose.msra.mxu0 0.0
  %1149 = vmatprep.subr.mxu0 0.0
  %1150 = vmatpush2.xpose.msra.mxu0 0.0
  %1151 = vmatprep.subr.mxu0 0.0
  %1152 = vmatpush2.xpose.msra.mxu0 0.0
  %1153 = vmatprep.subr.mxu0 0.0
  %1154 = vmatpush2.xpose.msra.mxu0 0.0
  %1155 = vmatprep.subr.mxu0 0.0
  %1156 = vmatpush2.xpose.msra.mxu0 0.0
  %1157 = vmatprep.subr.mxu0 0.0
  %1158 = vmatpush2.xpose.msra.mxu0 0.0
  %1159 = vmatprep.subr.mxu0 0.0
  %1160 = vmatpush2.xpose.msra.mxu0 0.0
  %1161 = vmatprep.subr.mxu0 0.0
  %1162 = vmatpush2.xpose.msra.mxu0 0.0
  %1163 = vmatprep.subr.mxu0 0.0
  %1164 = vmatpush2.xpose.msra.mxu0 0.0
  %1165 = vmatprep.subr.mxu0 0.0
  %1166 = vmatpush2.xpose.msra.mxu0 0.0
  %1167 = vmatprep.subr.mxu0 0.0
  %1168 = vmatpush2.xpose.msra.mxu0 0.0
  %1169 = vmatprep.subr.mxu0 0.0
  %1170 = vmatpush2.xpose.msra.mxu0 0.0
  %1171 = vmatprep.mubr.f32.mxu0 0.0
  %1172 = vmatmul.mubr.f32.gmra.mxu0 %v177
  %v1173 = vpop.f32.mrf.mxu0
  %v1174 = vadd.f32 0.0, %v1173
  %v1175 = vpop.f32.mrf.mxu0
  %1176 = vmatprep.mubr.f32.mxu0 0.0
  %1177 = vmatmul.mubr.f32.gmra.mxu0 %v180
  %v1178 = vpop.f32.mrf.mxu0
  %v1179 = vadd.f32 0.0, %v1178
  %v1180 = vpop.f32.mrf.mxu0
  %1181 = vdwg.mxu0
  %vm1182 = vcmp.ge.f32.partialorder %v1174, 0.0
  %vm1183 = vcmp.ge.f32.partialorder %v1179, 0.0
  %v1184 = vmul.f32 %v1174, 0.01
  %v1185 = vmul.f32 %v1179, 0.01
  %v1186 = vsel %vm1182, %v1174, %v1184
  %v1187 = vsel %vm1183, %v1179, %v1185
  %s1188 = scalar_lea.vmem %s8, 32
  %v1189 = vld [vmem:[%s1188] sm:$0xff]
  %v1190 = vld [vmem:[%s1188 + $0x8] sm:$0xff]
  %v1191 = vld [vmem:[%s1188 + $0x10] sm:$0xff]
  %v1192 = vld [vmem:[%s1188 + $0x18] sm:$0xff]
  %v1193 = vlaneseq
  %v1194 = vshrl.u32 %v1193, 7
  %v1195 = vsub.s32 0, %v1194
  %v1196 = vrot.slane %v1089, %v1195
  %v1198 = vsel %vm153, %v1087, 0
  %v1201 = vsel %vm153, %v1189, 0
  %v1204 = vsel %vm153, %v1190, 0
  %v1207 = vsel %vm153, %v1191, 0
  %v1210 = vsel %vm153, %v1192, 0
  %1212 = vmatprep.subr.mxu0 0.0
  %1213 = vmatpush1.xpose.msra.mxu0 0.0
  %1214 = vmatprep.subr.mxu0 0.0
  %1215 = vmatpush1.xpose.msra.mxu0 0.0
  %1216 = vmatprep.subr.mxu0 0.0
  %1217 = vmatpush1.xpose.msra.mxu0 0.0
  %1218 = vmatprep.subr.mxu0 0.0
  %1219 = vmatpush1.xpose.msra.mxu0 0.0
  %1220 = vmatprep.subr.mxu0 0.0
  %1221 = vmatpush1.xpose.msra.mxu0 0.0
  %1222 = vmatprep.subr.mxu0 0.0
  %1223 = vmatpush1.xpose.msra.mxu0 0.0
  %1224 = vmatprep.subr.mxu0 0.0
  %1225 = vmatpush1.xpose.msra.mxu0 0.0
  %1226 = vmatprep.subr.mxu0 0.0
  %1227 = vmatpush1.xpose.msra.mxu0 0.0
  %1228 = vmatprep.subr.mxu0 0.0
  %1229 = vmatpush1.xpose.msra.mxu0 0.0
  %1230 = vmatprep.subr.mxu0 0.0
  %1231 = vmatpush1.xpose.msra.mxu0 0.0
  %1232 = vmatprep.subr.mxu0 0.0
  %1233 = vmatpush1.xpose.msra.mxu0 0.0
  %1234 = vmatprep.subr.mxu0 0.0
  %1235 = vmatpush1.xpose.msra.mxu0 0.0
  %1236 = vmatprep.subr.mxu0 0.0
  %1237 = vmatpush1.xpose.msra.mxu0 %v1210
  %1238 = vmatprep.subr.mxu0 0.0
  %1239 = vmatpush1.xpose.msra.mxu0 %v1207
  %1240 = vmatprep.subr.mxu0 0.0
  %1241 = vmatpush1.xpose.msra.mxu0 %v1204
  %1242 = vmatprep.subr.mxu0 0.0
  %1243 = vmatpush1.xpose.msra.mxu0 %v1201
  %1244 = vmatprep.subr.mxu0 0.0
  %1245 = vmatpush2.xpose.msra.mxu0 0.0
  %1246 = vmatprep.subr.mxu0 0.0
  %1247 = vmatpush2.xpose.msra.mxu0 0.0
  %1248 = vmatprep.subr.mxu0 0.0
  %1249 = vmatpush2.xpose.msra.mxu0 0.0
  %1250 = vmatprep.subr.mxu0 0.0
  %1251 = vmatpush2.xpose.msra.mxu0 0.0
  %1252 = vmatprep.subr.mxu0 0.0
  %1253 = vmatpush2.xpose.msra.mxu0 0.0
  %1254 = vmatprep.subr.mxu0 0.0
  %1255 = vmatpush2.xpose.msra.mxu0 0.0
  %1256 = vmatprep.subr.mxu0 0.0
  %1257 = vmatpush2.xpose.msra.mxu0 0.0
  %1258 = vmatprep.subr.mxu0 0.0
  %1259 = vmatpush2.xpose.msra.mxu0 0.0
  %1260 = vmatprep.subr.mxu0 0.0
  %1261 = vmatpush2.xpose.msra.mxu0 0.0
  %1262 = vmatprep.subr.mxu0 0.0
  %1263 = vmatpush2.xpose.msra.mxu0 0.0
  %1264 = vmatprep.subr.mxu0 0.0
  %1265 = vmatpush2.xpose.msra.mxu0 0.0
  %1266 = vmatprep.subr.mxu0 0.0
  %1267 = vmatpush2.xpose.msra.mxu0 0.0
  %1268 = vmatprep.subr.mxu0 0.0
  %1269 = vmatpush2.xpose.msra.mxu0 0.0
  %1270 = vmatprep.subr.mxu0 0.0
  %1271 = vmatpush2.xpose.msra.mxu0 0.0
  %1272 = vmatprep.subr.mxu0 0.0
  %1273 = vmatpush2.xpose.msra.mxu0 0.0
  %1274 = vmatprep.subr.mxu0 0.0
  %1275 = vmatpush2.xpose.msra.mxu0 0.0
  %1276 = vmatprep.mubr.f32.mxu0 0.0
  %1277 = vmatmul.mubr.f32.gmra.mxu0 %v1198
  %v1278 = vpop.f32.mrf.mxu0
  %v1279 = vadd.f32 %v1196, %v1278
  %v1280 = vpop.f32.mrf.mxu0
  %1281 = vdwg.mxu0
  %s1282 = scalar_lea.vmem %s9, 64
  %v1283 = vld [vmem:[%s1282] sm:$0xff]
  %v1284 = vld [vmem:[%s1282 + $0x8] sm:$0xff]
  %v1285 = vld [vmem:[%s1282 + $0x10] sm:$0xff]
  %v1286 = vld [vmem:[%s1282 + $0x18] sm:$0xff]
  %v1287 = vld [vmem:[%s1282 + $0x20] sm:$0xff]
  %v1288 = vld [vmem:[%s1282 + $0x28] sm:$0xff]
  %v1289 = vld [vmem:[%s1282 + $0x30] sm:$0xff]
  %v1290 = vld [vmem:[%s1282 + $0x38] sm:$0xff]
  %v1292 = vsel %vm153, %v1186, 0
  %v1295 = vsel %vm153, %v1187, 0
  %v1298 = vsel %vm153, %v1283, 0
  %v1301 = vsel %vm153, %v1284, 0
  %v1304 = vsel %vm153, %v1285, 0
  %v1307 = vsel %vm153, %v1286, 0
  %v1310 = vsel %vm153, %v1287, 0
  %v1313 = vsel %vm153, %v1288, 0
  %v1316 = vsel %vm153, %v1289, 0
  %v1319 = vsel %vm153, %v1290, 0
  %1321 = vmatprep.subr.mxu0 0.0
  %1322 = vmatpush1.xpose.msra.mxu0 0.0
  %1323 = vmatprep.subr.mxu0 0.0
  %1324 = vmatpush1.xpose.msra.mxu0 0.0
  %1325 = vmatprep.subr.mxu0 0.0
  %1326 = vmatpush1.xpose.msra.mxu0 0.0
  %1327 = vmatprep.subr.mxu0 0.0
  %1328 = vmatpush1.xpose.msra.mxu0 0.0
  %1329 = vmatprep.subr.mxu0 0.0
  %1330 = vmatpush1.xpose.msra.mxu0 0.0
  %1331 = vmatprep.subr.mxu0 0.0
  %1332 = vmatpush1.xpose.msra.mxu0 0.0
  %1333 = vmatprep.subr.mxu0 0.0
  %1334 = vmatpush1.xpose.msra.mxu0 0.0
  %1335 = vmatprep.subr.mxu0 0.0
  %1336 = vmatpush1.xpose.msra.mxu0 0.0
  %1337 = vmatprep.subr.mxu0 0.0
  %1338 = vmatpush1.xpose.msra.mxu0 %v1319
  %1339 = vmatprep.subr.mxu0 0.0
  %1340 = vmatpush1.xpose.msra.mxu0 %v1316
  %1341 = vmatprep.subr.mxu0 0.0
  %1342 = vmatpush1.xpose.msra.mxu0 %v1313
  %1343 = vmatprep.subr.mxu0 0.0
  %1344 = vmatpush1.xpose.msra.mxu0 %v1310
  %1345 = vmatprep.subr.mxu0 0.0
  %1346 = vmatpush1.xpose.msra.mxu0 %v1307
  %1347 = vmatprep.subr.mxu0 0.0
  %1348 = vmatpush1.xpose.msra.mxu0 %v1304
  %1349 = vmatprep.subr.mxu0 0.0
  %1350 = vmatpush1.xpose.msra.mxu0 %v1301
  %1351 = vmatprep.subr.mxu0 0.0
  %1352 = vmatpush1.xpose.msra.mxu0 %v1298
  %1353 = vmatprep.subr.mxu0 0.0
  %1354 = vmatpush2.xpose.msra.mxu0 0.0
  %1355 = vmatprep.subr.mxu0 0.0
  %1356 = vmatpush2.xpose.msra.mxu0 0.0
  %1357 = vmatprep.subr.mxu0 0.0
  %1358 = vmatpush2.xpose.msra.mxu0 0.0
  %1359 = vmatprep.subr.mxu0 0.0
  %1360 = vmatpush2.xpose.msra.mxu0 0.0
  %1361 = vmatprep.subr.mxu0 0.0
  %1362 = vmatpush2.xpose.msra.mxu0 0.0
  %1363 = vmatprep.subr.mxu0 0.0
  %1364 = vmatpush2.xpose.msra.mxu0 0.0
  %1365 = vmatprep.subr.mxu0 0.0
  %1366 = vmatpush2.xpose.msra.mxu0 0.0
  %1367 = vmatprep.subr.mxu0 0.0
  %1368 = vmatpush2.xpose.msra.mxu0 0.0
  %1369 = vmatprep.subr.mxu0 0.0
  %1370 = vmatpush2.xpose.msra.mxu0 0.0
  %1371 = vmatprep.subr.mxu0 0.0
  %1372 = vmatpush2.xpose.msra.mxu0 0.0
  %1373 = vmatprep.subr.mxu0 0.0
  %1374 = vmatpush2.xpose.msra.mxu0 0.0
  %1375 = vmatprep.subr.mxu0 0.0
  %1376 = vmatpush2.xpose.msra.mxu0 0.0
  %1377 = vmatprep.subr.mxu0 0.0
  %1378 = vmatpush2.xpose.msra.mxu0 0.0
  %1379 = vmatprep.subr.mxu0 0.0
  %1380 = vmatpush2.xpose.msra.mxu0 0.0
  %1381 = vmatprep.subr.mxu0 0.0
  %1382 = vmatpush2.xpose.msra.mxu0 0.0
  %1383 = vmatprep.subr.mxu0 0.0
  %1384 = vmatpush2.xpose.msra.mxu0 0.0
  %1385 = vmatprep.mubr.f32.mxu0 0.0
  %1386 = vmatmul.mubr.f32.gmra.mxu0 %v1292
  %v1387 = vpop.f32.mrf.mxu0
  %v1388 = vadd.f32 0.0, %v1387
  %v1389 = vpop.f32.mrf.mxu0
  %1390 = vmatprep.mubr.f32.mxu0 0.0
  %1391 = vmatmul.mubr.f32.gmra.mxu0 %v1295
  %v1392 = vpop.f32.mrf.mxu0
  %v1393 = vadd.f32 0.0, %v1392
  %v1394 = vpop.f32.mrf.mxu0
  %1395 = vdwg.mxu0
  %v1396 = vlaneseq
  %v1397 = vshrl.u32 %v1396, 7
  %v1398 = vsub.s32 1, %v1397
  %v1399 = vrot.slane %v1089, %v1398
  %v1400 = vadd.f32 %v1388, %v1399
  %v1401 = vadd.f32 %v1393, %v1399
  %v1402 = vlaneseq
  %v1403 = vshrl.u32 %v1402, 7
  %v1404 = vsub.s32 2, %v1403
  %v1405 = vrot.slane %v1089, %v1404
  %1407 = vrot.lane.b32.xlu0 %v1405, 32
  %v1408 = vpop.permute.xlu0 %1407
  %v1410 = vadd.f32 %v1388, %v1408
  %v1411 = vadd.f32 %v1393, %v1408
  %v1414 = vunpack.c.l.s4 1966171168
  %v1415 = vunpack.c.0.s8 %v1414
  %v1416 = vlaneseq
  %v1417 = vshrl.u32 %v1416, 7
  %v1418 = vsub.s32 %v1415, %v1417
  %v1419 = vrot.slane %v1279, %v1418
  %v1420 = vcombine.high %v1419, %v1419
  %v1422 = vunpack.c.l.s4 1966171168
  %v1423 = vunpack.c.0.s8 %v1422
  %v1424 = vlaneseq
  %v1425 = vshrl.u32 %v1424, 7
  %v1426 = vsub.s32 %v1423, %v1425
  %v1427 = vrot.slane %v1419, %v1426
  %v1429 = vunpack.c.l.s4 1966171168
  %v1430 = vunpack.c.0.s8 %v1429
  %v1431 = vlaneseq
  %v1432 = vshrl.u32 %v1431, 7
  %v1433 = vsub.s32 %v1430, %v1432
  %v1434 = vrot.slane %v1420, %v1433
  %v1435 = vlaneseq
  %v1436 = vshrl.u32 %v1435, 7
  %v1437 = vsub.s32 0, %v1436
  %v1438 = vrot.slane %v1427, %v1437
  %v1439 = vlaneseq
  %v1440 = vshrl.u32 %v1439, 7
  %v1441 = vsub.s32 0, %v1440
  %v1442 = vrot.slane %v1434, %v1441
  %v1445 = vmul.f32 %v1400, %v1438
  %v1446 = vmul.f32 %v1401, %v1442
  %v1448 = vsel %vm153, %v1445, 0
  %v1451 = vsel %vm153, %v1446, 0
  %1453 = vmatprep.subr.mxu0 0.0
  %1454 = vmatpush1.msra.mxu0 0.0
  %1455 = vmatprep.subr.mxu0 0.0
  %1456 = vmatpush1.msra.mxu0 0.0
  %1457 = vmatprep.subr.mxu0 0.0
  %1458 = vmatpush1.msra.mxu0 0.0
  %1459 = vmatprep.subr.mxu0 0.0
  %1460 = vmatpush1.msra.mxu0 0.0
  %1461 = vmatprep.subr.mxu0 0.0
  %1462 = vmatpush1.msra.mxu0 0.0
  %1463 = vmatprep.subr.mxu0 0.0
  %1464 = vmatpush1.msra.mxu0 0.0
  %1465 = vmatprep.subr.mxu0 0.0
  %1466 = vmatpush1.msra.mxu0 0.0
  %1467 = vmatprep.subr.mxu0 0.0
  %1468 = vmatpush1.msra.mxu0 0.0
  %1469 = vmatprep.subr.mxu0 0.0
  %1470 = vmatpush1.msra.mxu0 0.0
  %1471 = vmatprep.subr.mxu0 0.0
  %1472 = vmatpush1.msra.mxu0 0.0
  %1473 = vmatprep.subr.mxu0 0.0
  %1474 = vmatpush1.msra.mxu0 0.0
  %1475 = vmatprep.subr.mxu0 0.0
  %1476 = vmatpush1.msra.mxu0 0.0
  %1477 = vmatprep.subr.mxu0 0.0
  %1478 = vmatpush1.msra.mxu0 %v159
  %1479 = vmatprep.subr.mxu0 0.0
  %1480 = vmatpush1.msra.mxu0 %v158
  %1481 = vmatprep.subr.mxu0 0.0
  %1482 = vmatpush1.msra.mxu0 %v157
  %1483 = vmatprep.subr.mxu0 0.0
  %1484 = vmatpush1.msra.mxu0 %v156
  %1485 = vmatprep.subr.mxu0 0.0
  %1486 = vmatpush2.msra.mxu0 0.0
  %1487 = vmatprep.subr.mxu0 0.0
  %1488 = vmatpush2.msra.mxu0 0.0
  %1489 = vmatprep.subr.mxu0 0.0
  %1490 = vmatpush2.msra.mxu0 0.0
  %1491 = vmatprep.subr.mxu0 0.0
  %1492 = vmatpush2.msra.mxu0 0.0
  %1493 = vmatprep.subr.mxu0 0.0
  %1494 = vmatpush2.msra.mxu0 0.0
  %1495 = vmatprep.subr.mxu0 0.0
  %1496 = vmatpush2.msra.mxu0 0.0
  %1497 = vmatprep.subr.mxu0 0.0
  %1498 = vmatpush2.msra.mxu0 0.0
  %1499 = vmatprep.subr.mxu0 0.0
  %1500 = vmatpush2.msra.mxu0 0.0
  %1501 = vmatprep.subr.mxu0 0.0
  %1502 = vmatpush2.msra.mxu0 0.0
  %1503 = vmatprep.subr.mxu0 0.0
  %1504 = vmatpush2.msra.mxu0 0.0
  %1505 = vmatprep.subr.mxu0 0.0
  %1506 = vmatpush2.msra.mxu0 0.0
  %1507 = vmatprep.subr.mxu0 0.0
  %1508 = vmatpush2.msra.mxu0 0.0
  %1509 = vmatprep.subr.mxu0 0.0
  %1510 = vmatpush2.msra.mxu0 0.0
  %1511 = vmatprep.subr.mxu0 0.0
  %1512 = vmatpush2.msra.mxu0 0.0
  %1513 = vmatprep.subr.mxu0 0.0
  %1514 = vmatpush2.msra.mxu0 0.0
  %1515 = vmatprep.subr.mxu0 0.0
  %1516 = vmatpush2.msra.mxu0 0.0
  %1517 = vmatprep.mubr.f32.mxu0 0.0
  %1518 = vmatmul.mubr.f32.gmra.mxu0 %v1448
  %v1519 = vpop.f32.mrf.mxu0
  %v1520 = vadd.f32 0.0, %v1519
  %v1521 = vpop.f32.mrf.mxu0
  %1522 = vmatprep.mubr.f32.mxu0 0.0
  %1523 = vmatmul.mubr.f32.gmra.mxu0 %v1451
  %v1524 = vpop.f32.mrf.mxu0
  %v1525 = vadd.f32 0.0, %v1524
  %v1526 = vpop.f32.mrf.mxu0
  %1527 = vdwg.mxu0
  %v1528 = vmul.f32 %v1520, 0.35355338
  %v1529 = vmul.f32 %v1525, 0.35355338
  %v1530 = vadd.f32 %v1528, %v617
  %v1531 = vadd.f32 %v1529, %v622
  %v1532 = vsel %vm626, %v1530, -inf
  %v1533 = vrot.slane %v1532, 4
  %v1534 = vmax.f32 %v1532, %v1533
  %v1535 = vrot.slane %v1534, 2
  %v1536 = vmax.f32 %v1534, %v1535
  %v1537 = vrot.slane %v1536, 1
  %v1538 = vmax.f32 %v1536, %v1537
  %v1539 = vsel %vm626, %v1531, -inf
  %v1540 = vrot.slane %v1539, 4
  %v1541 = vmax.f32 %v1539, %v1540
  %v1542 = vrot.slane %v1541, 2
  %v1543 = vmax.f32 %v1541, %v1542
  %v1544 = vrot.slane %v1543, 1
  %v1545 = vmax.f32 %v1543, %v1544
  %v1546 = vsub.f32 %v1530, %v1538
  %v1547 = vsub.f32 %v1531, %v1545
  %v1548 = vmul.f32 %v1546, 1.442695
  %v1549 = vpow.pop %v1548
  %v1550 = vmul.f32 %v1547, 1.442695
  %v1551 = vpow.pop %v1550
  %v1552 = vsel %vm626, %v1549, 0.0
  %v1553 = vrot.slane %v1552, 4
  %v1554 = vadd.f32 %v1552, %v1553
  %v1555 = vrot.slane %v1554, 2
  %v1556 = vadd.f32 %v1554, %v1555
  %v1557 = vrot.slane %v1556, 1
  %v1558 = vadd.f32 %v1556, %v1557
  %v1559 = vsel %vm626, %v1551, 0.0
  %v1560 = vrot.slane %v1559, 4
  %v1561 = vadd.f32 %v1559, %v1560
  %v1562 = vrot.slane %v1561, 2
  %v1563 = vadd.f32 %v1561, %v1562
  %v1564 = vrot.slane %v1563, 1
  %v1565 = vadd.f32 %v1563, %v1564
  %v1566 = vrcp.pop %v1558
  %v1567 = vmul.f32 %v1549, %v1566
  %v1568 = vrcp.pop %v1565
  %v1569 = vmul.f32 %v1551, %v1568
  %v1571 = vsel %vm626, %v1567, 0
  %v1574 = vsel %vm626, %v1569, 0
  %1576 = vmatprep.subr.mxu0 0.0
  %1577 = vmatpush1.xpose.msra.mxu0 0.0
  %1578 = vmatprep.subr.mxu0 0.0
  %1579 = vmatpush1.xpose.msra.mxu0 0.0
  %1580 = vmatprep.subr.mxu0 0.0
  %1581 = vmatpush1.xpose.msra.mxu0 0.0
  %1582 = vmatprep.subr.mxu0 0.0
  %1583 = vmatpush1.xpose.msra.mxu0 0.0
  %1584 = vmatprep.subr.mxu0 0.0
  %1585 = vmatpush1.xpose.msra.mxu0 0.0
  %1586 = vmatprep.subr.mxu0 0.0
  %1587 = vmatpush1.xpose.msra.mxu0 0.0
  %1588 = vmatprep.subr.mxu0 0.0
  %1589 = vmatpush1.xpose.msra.mxu0 0.0
  %1590 = vmatprep.subr.mxu0 0.0
  %1591 = vmatpush1.xpose.msra.mxu0 0.0
  %1592 = vmatprep.subr.mxu0 0.0
  %1593 = vmatpush1.xpose.msra.mxu0 0.0
  %1594 = vmatprep.subr.mxu0 0.0
  %1595 = vmatpush1.xpose.msra.mxu0 0.0
  %1596 = vmatprep.subr.mxu0 0.0
  %1597 = vmatpush1.xpose.msra.mxu0 0.0
  %1598 = vmatprep.subr.mxu0 0.0
  %1599 = vmatpush1.xpose.msra.mxu0 0.0
  %1600 = vmatprep.subr.mxu0 0.0
  %1601 = vmatpush1.xpose.msra.mxu0 %v681
  %1602 = vmatprep.subr.mxu0 0.0
  %1603 = vmatpush1.xpose.msra.mxu0 %v678
  %1604 = vmatprep.subr.mxu0 0.0
  %1605 = vmatpush1.xpose.msra.mxu0 %v675
  %1606 = vmatprep.subr.mxu0 0.0
  %1607 = vmatpush1.xpose.msra.mxu0 %v672
  %1608 = vmatprep.subr.mxu0 0.0
  %1609 = vmatpush2.xpose.msra.mxu0 0.0
  %1610 = vmatprep.subr.mxu0 0.0
  %1611 = vmatpush2.xpose.msra.mxu0 0.0
  %1612 = vmatprep.subr.mxu0 0.0
  %1613 = vmatpush2.xpose.msra.mxu0 0.0
  %1614 = vmatprep.subr.mxu0 0.0
  %1615 = vmatpush2.xpose.msra.mxu0 0.0
  %1616 = vmatprep.subr.mxu0 0.0
  %1617 = vmatpush2.xpose.msra.mxu0 0.0
  %1618 = vmatprep.subr.mxu0 0.0
  %1619 = vmatpush2.xpose.msra.mxu0 0.0
  %1620 = vmatprep.subr.mxu0 0.0
  %1621 = vmatpush2.xpose.msra.mxu0 0.0
  %1622 = vmatprep.subr.mxu0 0.0
  %1623 = vmatpush2.xpose.msra.mxu0 0.0
  %1624 = vmatprep.subr.mxu0 0.0
  %1625 = vmatpush2.xpose.msra.mxu0 0.0
  %1626 = vmatprep.subr.mxu0 0.0
  %1627 = vmatpush2.xpose.msra.mxu0 0.0
  %1628 = vmatprep.subr.mxu0 0.0
  %1629 = vmatpush2.xpose.msra.mxu0 0.0
  %1630 = vmatprep.subr.mxu0 0.0
  %1631 = vmatpush2.xpose.msra.mxu0 0.0
  %1632 = vmatprep.subr.mxu0 0.0
  %1633 = vmatpush2.xpose.msra.mxu0 0.0
  %1634 = vmatprep.subr.mxu0 0.0
  %1635 = vmatpush2.xpose.msra.mxu0 0.0
  %1636 = vmatprep.subr.mxu0 0.0
  %1637 = vmatpush2.xpose.msra.mxu0 0.0
  %1638 = vmatprep.subr.mxu0 0.0
  %1639 = vmatpush2.xpose.msra.mxu0 0.0
  %1640 = vmatprep.mubr.f32.mxu0 0.0
  %1641 = vmatmul.mubr.f32.gmra.mxu0 %v1571
  %v1642 = vpop.f32.mrf.mxu0
  %v1643 = vadd.f32 0.0, %v1642
  %v1644 = vpop.f32.mrf.mxu0
  %1645 = vmatprep.mubr.f32.mxu0 0.0
  %1646 = vmatmul.mubr.f32.gmra.mxu0 %v1574
  %v1647 = vpop.f32.mrf.mxu0
  %v1648 = vadd.f32 0.0, %v1647
  %v1649 = vpop.f32.mrf.mxu0
  %1650 = vdwg.mxu0
  %1653 = vrot.lane.b32.xlu0 %v1410, 96
  %v1654 = vpop.permute.xlu0 %1653
  %1655 = vrot.lane.b32.xlu0 %v1411, 96
  %v1656 = vpop.permute.xlu0 %1655
  %v1659 = vmul.f32 %v1643, %v1654
  %v1660 = vmul.f32 %v1648, %v1656
  %v1661 = vsel %vm153, %v1659, 0.0
  %v1662 = vrot.slane %v1661, 4
  %v1663 = vadd.f32 %v1661, %v1662
  %v1664 = vrot.slane %v1663, 2
  %v1665 = vadd.f32 %v1663, %v1664
  %v1666 = vrot.slane %v1665, 1
  %v1667 = vadd.f32 %v1665, %v1666
  %v1668 = vsel %vm153, %v1660, 0.0
  %v1669 = vrot.slane %v1668, 4
  %v1670 = vadd.f32 %v1668, %v1669
  %v1671 = vrot.slane %v1670, 2
  %v1672 = vadd.f32 %v1670, %v1671
  %v1673 = vrot.slane %v1672, 1
  %v1674 = vadd.f32 %v1672, %v1673
  %s1675 = scalar_lea.vmem %s10, 32
  %v1676 = vld [vmem:[%s1675] sm:$0xff]
  %v1677 = vld [vmem:[%s1675 + $0x8] sm:$0xff]
  %v1678 = vld [vmem:[%s1675 + $0x10] sm:$0xff]
  %v1679 = vld [vmem:[%s1675 + $0x18] sm:$0xff]
  %v1680 = vlaneseq
  %v1681 = vshrl.u32 %v1680, 7
  %v1682 = vsub.s32 3, %v1681
  %v1683 = vrot.slane %v1089, %v1682
  %v1686 = vsel %vm792, %v1674, %v1667
  %v1687 = vsel %vm153, %v1686, 0
  %v1690 = vsel %vm153, %v1676, 0
  %v1693 = vsel %vm153, %v1677, 0
  %v1696 = vsel %vm153, %v1678, 0
  %v1699 = vsel %vm153, %v1679, 0
  %1701 = vmatprep.subr.mxu0 0.0
  %1702 = vmatpush1.xpose.msra.mxu0 0.0
  %1703 = vmatprep.subr.mxu0 0.0
  %1704 = vmatpush1.xpose.msra.mxu0 0.0
  %1705 = vmatprep.subr.mxu0 0.0
  %1706 = vmatpush1.xpose.msra.mxu0 0.0
  %1707 = vmatprep.subr.mxu0 0.0
  %1708 = vmatpush1.xpose.msra.mxu0 0.0
  %1709 = vmatprep.subr.mxu0 0.0
  %1710 = vmatpush1.xpose.msra.mxu0 0.0
  %1711 = vmatprep.subr.mxu0 0.0
  %1712 = vmatpush1.xpose.msra.mxu0 0.0
  %1713 = vmatprep.subr.mxu0 0.0
  %1714 = vmatpush1.xpose.msra.mxu0 0.0
  %1715 = vmatprep.subr.mxu0 0.0
  %1716 = vmatpush1.xpose.msra.mxu0 0.0
  %1717 = vmatprep.subr.mxu0 0.0
  %1718 = vmatpush1.xpose.msra.mxu0 0.0
  %1719 = vmatprep.subr.mxu0 0.0
  %1720 = vmatpush1.xpose.msra.mxu0 0.0
  %1721 = vmatprep.subr.mxu0 0.0
  %1722 = vmatpush1.xpose.msra.mxu0 0.0
  %1723 = vmatprep.subr.mxu0 0.0
  %1724 = vmatpush1.xpose.msra.mxu0 0.0
  %1725 = vmatprep.subr.mxu0 0.0
  %1726 = vmatpush1.xpose.msra.mxu0 %v1699
  %1727 = vmatprep.subr.mxu0 0.0
  %1728 = vmatpush1.xpose.msra.mxu0 %v1696
  %1729 = vmatprep.subr.mxu0 0.0
  %1730 = vmatpush1.xpose.msra.mxu0 %v1693
  %1731 = vmatprep.subr.mxu0 0.0
  %1732 = vmatpush1.xpose.msra.mxu0 %v1690
  %1733 = vmatprep.subr.mxu0 0.0
  %1734 = vmatpush2.xpose.msra.mxu0 0.0
  %1735 = vmatprep.subr.mxu0 0.0
  %1736 = vmatpush2.xpose.msra.mxu0 0.0
  %1737 = vmatprep.subr.mxu0 0.0
  %1738 = vmatpush2.xpose.msra.mxu0 0.0
  %1739 = vmatprep.subr.mxu0 0.0
  %1740 = vmatpush2.xpose.msra.mxu0 0.0
  %1741 = vmatprep.subr.mxu0 0.0
  %1742 = vmatpush2.xpose.msra.mxu0 0.0
  %1743 = vmatprep.subr.mxu0 0.0
  %1744 = vmatpush2.xpose.msra.mxu0 0.0
  %1745 = vmatprep.subr.mxu0 0.0
  %1746 = vmatpush2.xpose.msra.mxu0 0.0
  %1747 = vmatprep.subr.mxu0 0.0
  %1748 = vmatpush2.xpose.msra.mxu0 0.0
  %1749 = vmatprep.subr.mxu0 0.0
  %1750 = vmatpush2.xpose.msra.mxu0 0.0
  %1751 = vmatprep.subr.mxu0 0.0
  %1752 = vmatpush2.xpose.msra.mxu0 0.0
  %1753 = vmatprep.subr.mxu0 0.0
  %1754 = vmatpush2.xpose.msra.mxu0 0.0
  %1755 = vmatprep.subr.mxu0 0.0
  %1756 = vmatpush2.xpose.msra.mxu0 0.0
  %1757 = vmatprep.subr.mxu0 0.0
  %1758 = vmatpush2.xpose.msra.mxu0 0.0
  %1759 = vmatprep.subr.mxu0 0.0
  %1760 = vmatpush2.xpose.msra.mxu0 0.0
  %1761 = vmatprep.subr.mxu0 0.0
  %1762 = vmatpush2.xpose.msra.mxu0 0.0
  %1763 = vmatprep.subr.mxu0 0.0
  %1764 = vmatpush2.xpose.msra.mxu0 0.0
  %1765 = vmatprep.mubr.f32.mxu0 0.0
  %1766 = vmatmul.mubr.f32.gmra.mxu0 %v1687
  %v1767 = vpop.f32.mrf.mxu0
  %v1768 = vadd.f32 %v1683, %v1767
  %v1769 = vpop.f32.mrf.mxu0
  %1770 = vdwg.mxu0
  %s1771 = scalar_lea.vmem %s11, 32
  %v1772 = vld [vmem:[%s1771] sm:$0xff]
  %v1773 = vld [vmem:[%s1771 + $0x8] sm:$0xff]
  %v1774 = vld [vmem:[%s1771 + $0x10] sm:$0xff]
  %v1775 = vld [vmem:[%s1771 + $0x18] sm:$0xff]
  %v1777 = vsel %vm153, %v1768, 0
  %v1780 = vsel %vm153, %v1772, 0
  %v1783 = vsel %vm153, %v1773, 0
  %v1786 = vsel %vm153, %v1774, 0
  %v1789 = vsel %vm153, %v1775, 0
  %1791 = vmatprep.subr.mxu0 0.0
  %1792 = vmatpush1.xpose.msra.mxu0 0.0
  %1793 = vmatprep.subr.mxu0 0.0
  %1794 = vmatpush1.xpose.msra.mxu0 0.0
  %1795 = vmatprep.subr.mxu0 0.0
  %1796 = vmatpush1.xpose.msra.mxu0 0.0
  %1797 = vmatprep.subr.mxu0 0.0
  %1798 = vmatpush1.xpose.msra.mxu0 0.0
  %1799 = vmatprep.subr.mxu0 0.0
  %1800 = vmatpush1.xpose.msra.mxu0 0.0
  %1801 = vmatprep.subr.mxu0 0.0
  %1802 = vmatpush1.xpose.msra.mxu0 0.0
  %1803 = vmatprep.subr.mxu0 0.0
  %1804 = vmatpush1.xpose.msra.mxu0 0.0
  %1805 = vmatprep.subr.mxu0 0.0
  %1806 = vmatpush1.xpose.msra.mxu0 0.0
  %1807 = vmatprep.subr.mxu0 0.0
  %1808 = vmatpush1.xpose.msra.mxu0 0.0
  %1809 = vmatprep.subr.mxu0 0.0
  %1810 = vmatpush1.xpose.msra.mxu0 0.0
  %1811 = vmatprep.subr.mxu0 0.0
  %1812 = vmatpush1.xpose.msra.mxu0 0.0
  %1813 = vmatprep.subr.mxu0 0.0
  %1814 = vmatpush1.xpose.msra.mxu0 0.0
  %1815 = vmatprep.subr.mxu0 0.0
  %1816 = vmatpush1.xpose.msra.mxu0 %v1789
  %1817 = vmatprep.subr.mxu0 0.0
  %1818 = vmatpush1.xpose.msra.mxu0 %v1786
  %1819 = vmatprep.subr.mxu0 0.0
  %1820 = vmatpush1.xpose.msra.mxu0 %v1783
  %1821 = vmatprep.subr.mxu0 0.0
  %1822 = vmatpush1.xpose.msra.mxu0 %v1780
  %1823 = vmatprep.subr.mxu0 0.0
  %1824 = vmatpush2.xpose.msra.mxu0 0.0
  %1825 = vmatprep.subr.mxu0 0.0
  %1826 = vmatpush2.xpose.msra.mxu0 0.0
  %1827 = vmatprep.subr.mxu0 0.0
  %1828 = vmatpush2.xpose.msra.mxu0 0.0
  %1829 = vmatprep.subr.mxu0 0.0
  %1830 = vmatpush2.xpose.msra.mxu0 0.0
  %1831 = vmatprep.subr.mxu0 0.0
  %1832 = vmatpush2.xpose.msra.mxu0 0.0
  %1833 = vmatprep.subr.mxu0 0.0
  %1834 = vmatpush2.xpose.msra.mxu0 0.0
  %1835 = vmatprep.subr.mxu0 0.0
  %1836 = vmatpush2.xpose.msra.mxu0 0.0
  %1837 = vmatprep.subr.mxu0 0.0
  %1838 = vmatpush2.xpose.msra.mxu0 0.0
  %1839 = vmatprep.subr.mxu0 0.0
  %1840 = vmatpush2.xpose.msra.mxu0 0.0
  %1841 = vmatprep.subr.mxu0 0.0
  %1842 = vmatpush2.xpose.msra.mxu0 0.0
  %1843 = vmatprep.subr.mxu0 0.0
  %1844 = vmatpush2.xpose.msra.mxu0 0.0
  %1845 = vmatprep.subr.mxu0 0.0
  %1846 = vmatpush2.xpose.msra.mxu0 0.0
  %1847 = vmatprep.subr.mxu0 0.0
  %1848 = vmatpush2.xpose.msra.mxu0 0.0
  %1849 = vmatprep.subr.mxu0 0.0
  %1850 = vmatpush2.xpose.msra.mxu0 0.0
  %1851 = vmatprep.subr.mxu0 0.0
  %1852 = vmatpush2.xpose.msra.mxu0 0.0
  %1853 = vmatprep.subr.mxu0 0.0
  %1854 = vmatpush2.xpose.msra.mxu0 0.0
  %1855 = vmatprep.mubr.f32.mxu0 0.0
  %1856 = vmatmul.mubr.f32.gmra.mxu0 %v1777
  %v1857 = vpop.f32.mrf.mxu0
  %v1858 = vadd.f32 0.0, %v1857
  %v1859 = vpop.f32.mrf.mxu0
  %1860 = vdwg.mxu0
  %vm1861 = vcmp.ge.f32.partialorder %v1858, 0.0
  %v1862 = vmul.f32 %v1858, 0.01
  %v1863 = vsel %vm1861, %v1858, %v1862
  %v1864 = vadd.f32 %v1863, %v1087
  %v1865 = vsel %vm971, %v1864, 0.0
  %1866 = vadd.xlane.f32.xlu0 %v1865
  %v1867 = vpop.xlane.xlu0 %1866
  %v1868 = vmul.f32 %v1867, %v975
  %v1869 = vsub.f32 %v1864, %v1868
  %v1870 = vmul.f32 %v1869, %v1869
  %v1871 = vsel %vm971, %v1870, 0.0
  %1872 = vadd.xlane.f32.xlu0 %v1871
  %v1873 = vpop.xlane.xlu0 %1872
  %v1874 = vmul.f32 %v1873, %v975
  %v1875 = vadd.f32 %v1874, 1e-05
  %v1876 = vrsqrt.pop %v1875
  %v1877 = vmul.f32 %v1869, %v1876
  %v1878 = vlaneseq
  %v1879 = vshrl.u32 %v1878, 7
  %v1880 = vsub.s32 4, %v1879
  %v1881 = vrot.slane %v1089, %v1880
  %v1882 = vmul.f32 %v1877, %v1881
  %v1883 = vlaneseq
  %v1884 = vshrl.u32 %v1883, 7
  %v1885 = vsub.s32 5, %v1884
  %v1886 = vrot.slane %v1089, %v1885
  %v1887 = vadd.f32 %v1882, %v1886
  %s1888 = scalar_lea.vmem %s12, 32
  %v1889 = vld [vmem:[%s1888] sm:$0xff]
  %v1890 = vld [vmem:[%s1888 + $0x8] sm:$0xff]
  %v1891 = vld [vmem:[%s1888 + $0x10] sm:$0xff]
  %v1892 = vld [vmem:[%s1888 + $0x18] sm:$0xff]
  %v1894 = vsel %vm153, %v1887, 0
  %v1897 = vsel %vm153, %v1889, 0
  %v1900 = vsel %vm153, %v1890, 0
  %v1903 = vsel %vm153, %v1891, 0
  %v1906 = vsel %vm153, %v1892, 0
  %1908 = vmatprep.subr.mxu0 0.0
  %1909 = vmatpush1.xpose.msra.mxu0 0.0
  %1910 = vmatprep.subr.mxu0 0.0
  %1911 = vmatpush1.xpose.msra.mxu0 0.0
  %1912 = vmatprep.subr.mxu0 0.0
  %1913 = vmatpush1.xpose.msra.mxu0 0.0
  %1914 = vmatprep.subr.mxu0 0.0
  %1915 = vmatpush1.xpose.msra.mxu0 0.0
  %1916 = vmatprep.subr.mxu0 0.0
  %1917 = vmatpush1.xpose.msra.mxu0 0.0
  %1918 = vmatprep.subr.mxu0 0.0
  %1919 = vmatpush1.xpose.msra.mxu0 0.0
  %1920 = vmatprep.subr.mxu0 0.0
  %1921 = vmatpush1.xpose.msra.mxu0 0.0
  %1922 = vmatprep.subr.mxu0 0.0
  %1923 = vmatpush1.xpose.msra.mxu0 0.0
  %1924 = vmatprep.subr.mxu0 0.0
  %1925 = vmatpush1.xpose.msra.mxu0 0.0
  %1926 = vmatprep.subr.mxu0 0.0
  %1927 = vmatpush1.xpose.msra.mxu0 0.0
  %1928 = vmatprep.subr.mxu0 0.0
  %1929 = vmatpush1.xpose.msra.mxu0 0.0
  %1930 = vmatprep.subr.mxu0 0.0
  %1931 = vmatpush1.xpose.msra.mxu0 0.0
  %1932 = vmatprep.subr.mxu0 0.0
  %1933 = vmatpush1.xpose.msra.mxu0 %v1906
  %1934 = vmatprep.subr.mxu0 0.0
  %1935 = vmatpush1.xpose.msra.mxu0 %v1903
  %1936 = vmatprep.subr.mxu0 0.0
  %1937 = vmatpush1.xpose.msra.mxu0 %v1900
  %1938 = vmatprep.subr.mxu0 0.0
  %1939 = vmatpush1.xpose.msra.mxu0 %v1897
  %1940 = vmatprep.subr.mxu0 0.0
  %1941 = vmatpush2.xpose.msra.mxu0 0.0
  %1942 = vmatprep.subr.mxu0 0.0
  %1943 = vmatpush2.xpose.msra.mxu0 0.0
  %1944 = vmatprep.subr.mxu0 0.0
  %1945 = vmatpush2.xpose.msra.mxu0 0.0
  %1946 = vmatprep.subr.mxu0 0.0
  %1947 = vmatpush2.xpose.msra.mxu0 0.0
  %1948 = vmatprep.subr.mxu0 0.0
  %1949 = vmatpush2.xpose.msra.mxu0 0.0
  %1950 = vmatprep.subr.mxu0 0.0
  %1951 = vmatpush2.xpose.msra.mxu0 0.0
  %1952 = vmatprep.subr.mxu0 0.0
  %1953 = vmatpush2.xpose.msra.mxu0 0.0
  %1954 = vmatprep.subr.mxu0 0.0
  %1955 = vmatpush2.xpose.msra.mxu0 0.0
  %1956 = vmatprep.subr.mxu0 0.0
  %1957 = vmatpush2.xpose.msra.mxu0 0.0
  %1958 = vmatprep.subr.mxu0 0.0
  %1959 = vmatpush2.xpose.msra.mxu0 0.0
  %1960 = vmatprep.subr.mxu0 0.0
  %1961 = vmatpush2.xpose.msra.mxu0 0.0
  %1962 = vmatprep.subr.mxu0 0.0
  %1963 = vmatpush2.xpose.msra.mxu0 0.0
  %1964 = vmatprep.subr.mxu0 0.0
  %1965 = vmatpush2.xpose.msra.mxu0 0.0
  %1966 = vmatprep.subr.mxu0 0.0
  %1967 = vmatpush2.xpose.msra.mxu0 0.0
  %1968 = vmatprep.subr.mxu0 0.0
  %1969 = vmatpush2.xpose.msra.mxu0 0.0
  %1970 = vmatprep.subr.mxu0 0.0
  %1971 = vmatpush2.xpose.msra.mxu0 0.0
  %1972 = vmatprep.mubr.f32.mxu0 0.0
  %1973 = vmatmul.mubr.f32.gmra.mxu0 %v1894
  %v1974 = vpop.f32.mrf.mxu0
  %v1975 = vadd.f32 0.0, %v1974
  %v1976 = vpop.f32.mrf.mxu0
  %1977 = vdwg.mxu0
  %vm1978 = vcmp.ge.f32.partialorder %v1975, 0.0
  %v1979 = vmul.f32 %v1975, 0.01
  %v1980 = vsel %vm1978, %v1975, %v1979
  %v1981 = vld [vmem:[%s5] sm:$0xff]
  %v1982 = vld [vmem:[%s5 + $0x8] sm:$0xff]
  %v1983 = vld [vmem:[%s5 + $0x10] sm:$0xff]
  %v1984 = vld [vmem:[%s5 + $0x18] sm:$0xff]
  %v1986 = vsel %vm153, %v1980, 0
  %v1989 = vsel %vm153, %v1981, 0
  %v1992 = vsel %vm153, %v1982, 0
  %v1995 = vsel %vm153, %v1983, 0
  %v1998 = vsel %vm153, %v1984, 0
  %2000 = vmatprep.subr.mxu0 0.0
  %2001 = vmatpush1.xpose.msra.mxu0 0.0
  %2002 = vmatprep.subr.mxu0 0.0
  %2003 = vmatpush1.xpose.msra.mxu0 0.0
  %2004 = vmatprep.subr.mxu0 0.0
  %2005 = vmatpush1.xpose.msra.mxu0 0.0
  %2006 = vmatprep.subr.mxu0 0.0
  %2007 = vmatpush1.xpose.msra.mxu0 0.0
  %2008 = vmatprep.subr.mxu0 0.0
  %2009 = vmatpush1.xpose.msra.mxu0 0.0
  %2010 = vmatprep.subr.mxu0 0.0
  %2011 = vmatpush1.xpose.msra.mxu0 0.0
  %2012 = vmatprep.subr.mxu0 0.0
  %2013 = vmatpush1.xpose.msra.mxu0 0.0
  %2014 = vmatprep.subr.mxu0 0.0
  %2015 = vmatpush1.xpose.msra.mxu0 0.0
  %2016 = vmatprep.subr.mxu0 0.0
  %2017 = vmatpush1.xpose.msra.mxu0 0.0
  %2018 = vmatprep.subr.mxu0 0.0
  %2019 = vmatpush1.xpose.msra.mxu0 0.0
  %2020 = vmatprep.subr.mxu0 0.0
  %2021 = vmatpush1.xpose.msra.mxu0 0.0
  %2022 = vmatprep.subr.mxu0 0.0
  %2023 = vmatpush1.xpose.msra.mxu0 0.0
  %2024 = vmatprep.subr.mxu0 0.0
  %2025 = vmatpush1.xpose.msra.mxu0 %v1998
  %2026 = vmatprep.subr.mxu0 0.0
  %2027 = vmatpush1.xpose.msra.mxu0 %v1995
  %2028 = vmatprep.subr.mxu0 0.0
  %2029 = vmatpush1.xpose.msra.mxu0 %v1992
  %2030 = vmatprep.subr.mxu0 0.0
  %2031 = vmatpush1.xpose.msra.mxu0 %v1989
  %2032 = vmatprep.subr.mxu0 0.0
  %2033 = vmatpush2.xpose.msra.mxu0 0.0
  %2034 = vmatprep.subr.mxu0 0.0
  %2035 = vmatpush2.xpose.msra.mxu0 0.0
  %2036 = vmatprep.subr.mxu0 0.0
  %2037 = vmatpush2.xpose.msra.mxu0 0.0
  %2038 = vmatprep.subr.mxu0 0.0
  %2039 = vmatpush2.xpose.msra.mxu0 0.0
  %2040 = vmatprep.subr.mxu0 0.0
  %2041 = vmatpush2.xpose.msra.mxu0 0.0
  %2042 = vmatprep.subr.mxu0 0.0
  %2043 = vmatpush2.xpose.msra.mxu0 0.0
  %2044 = vmatprep.subr.mxu0 0.0
  %2045 = vmatpush2.xpose.msra.mxu0 0.0
  %2046 = vmatprep.subr.mxu0 0.0
  %2047 = vmatpush2.xpose.msra.mxu0 0.0
  %2048 = vmatprep.subr.mxu0 0.0
  %2049 = vmatpush2.xpose.msra.mxu0 0.0
  %2050 = vmatprep.subr.mxu0 0.0
  %2051 = vmatpush2.xpose.msra.mxu0 0.0
  %2052 = vmatprep.subr.mxu0 0.0
  %2053 = vmatpush2.xpose.msra.mxu0 0.0
  %2054 = vmatprep.subr.mxu0 0.0
  %2055 = vmatpush2.xpose.msra.mxu0 0.0
  %2056 = vmatprep.subr.mxu0 0.0
  %2057 = vmatpush2.xpose.msra.mxu0 0.0
  %2058 = vmatprep.subr.mxu0 0.0
  %2059 = vmatpush2.xpose.msra.mxu0 0.0
  %2060 = vmatprep.subr.mxu0 0.0
  %2061 = vmatpush2.xpose.msra.mxu0 0.0
  %2062 = vmatprep.subr.mxu0 0.0
  %2063 = vmatpush2.xpose.msra.mxu0 0.0
  %2064 = vmatprep.mubr.f32.mxu0 0.0
  %2065 = vmatmul.mubr.f32.gmra.mxu0 %v1986
  %v2066 = vpop.f32.mrf.mxu0
  %v2067 = vadd.f32 0.0, %v2066
  %v2068 = vpop.f32.mrf.mxu0
  %2069 = vdwg.mxu0
  %vm2070 = vcmp.ge.f32.partialorder %v2067, 0.0
  %v2071 = vmul.f32 %v2067, 0.01
  %v2072 = vsel %vm2070, %v2067, %v2071
  %v2073 = vld [vmem:[%s6] sm:$0xff]
  %v2074 = vld [vmem:[%s6 + $0x8] sm:$0xff]
  %v2075 = vld [vmem:[%s6 + $0x10] sm:$0xff]
  %v2076 = vld [vmem:[%s6 + $0x18] sm:$0xff]
  %v2077 = vld [vmem:[%s6 + $0x20] sm:$0xff]
  %v2078 = vld [vmem:[%s6 + $0x28] sm:$0xff]
  %v2079 = vld [vmem:[%s6 + $0x30] sm:$0xff]
  %v2080 = vld [vmem:[%s6 + $0x38] sm:$0xff]
  %v2081 = vld [vmem:[%s6 + $0x40] sm:$0xff]
  %v2082 = vld [vmem:[%s6 + $0x48] sm:$0xff]
  %v2083 = vld [vmem:[%s6 + $0x50] sm:$0xff]
  %v2084 = vld [vmem:[%s6 + $0x58] sm:$0xff]
  %v2086 = vsel %vm153, %v2072, 0
  %v2089 = vsel %vm153, %v2073, 0
  %v2092 = vsel %vm153, %v2074, 0
  %v2095 = vsel %vm153, %v2075, 0
  %v2098 = vsel %vm153, %v2076, 0
  %v2101 = vsel %vm153, %v2077, 0
  %v2104 = vsel %vm153, %v2078, 0
  %v2107 = vsel %vm153, %v2079, 0
  %v2110 = vsel %vm153, %v2080, 0
  %v2113 = vsel %vm153, %v2081, 0
  %v2116 = vsel %vm153, %v2082, 0
  %v2119 = vsel %vm153, %v2083, 0
  %v2122 = vsel %vm153, %v2084, 0
  %2124 = vmatprep.subr.mxu0 0.0
  %2125 = vmatpush1.xpose.msra.mxu0 0.0
  %2126 = vmatprep.subr.mxu0 0.0
  %2127 = vmatpush1.xpose.msra.mxu0 0.0
  %2128 = vmatprep.subr.mxu0 0.0
  %2129 = vmatpush1.xpose.msra.mxu0 0.0
  %2130 = vmatprep.subr.mxu0 0.0
  %2131 = vmatpush1.xpose.msra.mxu0 0.0
  %2132 = vmatprep.subr.mxu0 0.0
  %2133 = vmatpush1.xpose.msra.mxu0 %v2122
  %2134 = vmatprep.subr.mxu0 0.0
  %2135 = vmatpush1.xpose.msra.mxu0 %v2119
  %2136 = vmatprep.subr.mxu0 0.0
  %2137 = vmatpush1.xpose.msra.mxu0 %v2116
  %2138 = vmatprep.subr.mxu0 0.0
  %2139 = vmatpush1.xpose.msra.mxu0 %v2113
  %2140 = vmatprep.subr.mxu0 0.0
  %2141 = vmatpush1.xpose.msra.mxu0 %v2110
  %2142 = vmatprep.subr.mxu0 0.0
  %2143 = vmatpush1.xpose.msra.mxu0 %v2107
  %2144 = vmatprep.subr.mxu0 0.0
  %2145 = vmatpush1.xpose.msra.mxu0 %v2104
  %2146 = vmatprep.subr.mxu0 0.0
  %2147 = vmatpush1.xpose.msra.mxu0 %v2101
  %2148 = vmatprep.subr.mxu0 0.0
  %2149 = vmatpush1.xpose.msra.mxu0 %v2098
  %2150 = vmatprep.subr.mxu0 0.0
  %2151 = vmatpush1.xpose.msra.mxu0 %v2095
  %2152 = vmatprep.subr.mxu0 0.0
  %2153 = vmatpush1.xpose.msra.mxu0 %v2092
  %2154 = vmatprep.subr.mxu0 0.0
  %2155 = vmatpush1.xpose.msra.mxu0 %v2089
  %2156 = vmatprep.subr.mxu0 0.0
  %2157 = vmatpush2.xpose.msra.mxu0 0.0
  %2158 = vmatprep.subr.mxu0 0.0
  %2159 = vmatpush2.xpose.msra.mxu0 0.0
  %2160 = vmatprep.subr.mxu0 0.0
  %2161 = vmatpush2.xpose.msra.mxu0 0.0
  %2162 = vmatprep.subr.mxu0 0.0
  %2163 = vmatpush2.xpose.msra.mxu0 0.0
  %2164 = vmatprep.subr.mxu0 0.0
  %2165 = vmatpush2.xpose.msra.mxu0 0.0
  %2166 = vmatprep.subr.mxu0 0.0
  %2167 = vmatpush2.xpose.msra.mxu0 0.0
  %2168 = vmatprep.subr.mxu0 0.0
  %2169 = vmatpush2.xpose.msra.mxu0 0.0
  %2170 = vmatprep.subr.mxu0 0.0
  %2171 = vmatpush2.xpose.msra.mxu0 0.0
  %2172 = vmatprep.subr.mxu0 0.0
  %2173 = vmatpush2.xpose.msra.mxu0 0.0
  %2174 = vmatprep.subr.mxu0 0.0
  %2175 = vmatpush2.xpose.msra.mxu0 0.0
  %2176 = vmatprep.subr.mxu0 0.0
  %2177 = vmatpush2.xpose.msra.mxu0 0.0
  %2178 = vmatprep.subr.mxu0 0.0
  %2179 = vmatpush2.xpose.msra.mxu0 0.0
  %2180 = vmatprep.subr.mxu0 0.0
  %2181 = vmatpush2.xpose.msra.mxu0 0.0
  %2182 = vmatprep.subr.mxu0 0.0
  %2183 = vmatpush2.xpose.msra.mxu0 0.0
  %2184 = vmatprep.subr.mxu0 0.0
  %2185 = vmatpush2.xpose.msra.mxu0 0.0
  %2186 = vmatprep.subr.mxu0 0.0
  %2187 = vmatpush2.xpose.msra.mxu0 0.0
  %2188 = vmatprep.mubr.f32.mxu0 0.0
  %2189 = vmatmul.mubr.f32.gmra.mxu0 %v2086
  %v2190 = vpop.f32.mrf.mxu0
  %v2191 = vadd.f32 0.0, %v2190
  %v2192 = vpop.f32.mrf.mxu0
  %2193 = vdwg.mxu0
  %2195 = vrot.lane.b32.xlu0 %v2191, 32
  %v2196 = vpop.permute.xlu0 %2195
  %v2198 = vsel %vm153, %v1980, %v2196
  %2199 = vst [vmem:[%s14] sm:$0x3] %v2198
  // Predicated region
  $region58: #{disc_forward_pallas.1} parent=0 // pred_check
    _
  $region59: #{disc_forward_pallas.1} parent=0 // pred_check_branch
    %2201 = sbr.rel (0) target = $region61
  $region60: #{disc_forward_pallas.1} parent=0 // pred_region
    _
  $region61: #{disc_forward_pallas.1} parent=0 // pred_fallthru
    _
  // Predicated region
  $region62: #{disc_forward_pallas.1} parent=0 // pred_check
    _
  $region63: #{disc_forward_pallas.1} parent=0 // pred_check_branch
    %2203 = sbr.rel (0) target = $region65
  $region64: #{disc_forward_pallas.1} parent=0 // pred_region
    _
  $region65: #{disc_forward_pallas.1} parent=0 // pred_fallthru
    _

</llo_original>
